<compile_context>
chip_gen: v5e
topology: v5e:2x2
jax: 0.10.0
libtpu: 0.0.40
codegen_flags: <defaults>
</compile_context>

<pallas_src>
import functools
import math

import jax
import jax.numpy as jnp
from jax import lax
from jax.experimental import pallas as pl
from jax.experimental.pallas import tpu as pltpu

OUT_PAD = 128   # lane-dense padded width for the output head
SUBLANES = 8    # f32 sublane tile


def _sigmoid(x):
    # tanh-based sigmoid: one EUP op per element, robust Mosaic lowering.
    return 0.5 * (jnp.tanh(0.5 * x) + 1.0)


# ----------------------------------------------------------------------------
# Single fused kernel: Conv1d('same') + MaxPool1d(2) + LSTM + Linear head
# ----------------------------------------------------------------------------
def fused_forward_kernel(x_ref, wc_ref, bc_ref, wih_ref, whh_ref, bl_ref,
                         wo_ref, bo_ref, o_ref, gates_scr):
    """
    x_ref     : (B_pad, L)        f32  flattened input (L = seq_len*enc_in), batch padded to 8
    wc_ref    : (F, K)            f32  SMEM conv weight (in_channels == 1 squeezed)
    bc_ref    : (F,)              f32  SMEM conv bias
    wih_ref   : (D_in, 4H)        bf16 transposed weight_ih_l0, gate cols reordered [i,f,o,g]
    whh_ref   : (H, 4H)           bf16 transposed weight_hh_l0, same column order
    bl_ref    : (1, 4H)           f32  bias_ih + bias_hh, same column order
    wo_ref    : (H, OUT_PAD)      bf16 transposed Linear weight, zero-padded to 128 lanes
    bo_ref    : (1, OUT_PAD)      f32  zero-padded
    o_ref     : (B_pad, OUT_PAD)  f32  head output (first B rows / label_len lanes valid)
    gates_scr : (T, B_pad, 4H)    f32  hoisted input-projection gates, one aligned tile per step
    """
    B_pad, L = x_ref.shape
    F, K = wc_ref.shape
    d_in = wih_ref.shape[0]
    H = whh_ref.shape[0]
    pad = (K - 1) // 2
    Lh = L // 2
    T = gates_scr.shape[0]

    x = x_ref[...]                                            # (B_pad, L) f32

    # ---- Conv1d(1 -> F, K, padding='same') ----------------------------------
    # K value-level shifted copies of the signal (no padded scratch, no
    # unaligned scratch stores), shared across all filters.
    shifted = []
    for k in range(K):
        off = k - pad
        if off == 0:
            s = x
        elif off > 0:
            s = jnp.concatenate(
                [x[:, off:], jnp.zeros((B_pad, off), x.dtype)], axis=-1)
        else:
            s = jnp.concatenate(
                [jnp.zeros((B_pad, -off), x.dtype), x[:, :L + off]], axis=-1)
        shifted.append(s)

    # Scalar-broadcast FMAs (weights/bias read from SMEM), one slab per filter,
    # concatenated lane-major in exactly the torch .view(B,1,-1) flatten order.
    rows = []
    for f in range(F):
        acc_f = shifted[0] * wc_ref[f, 0]
        for k in range(1, K):
            acc_f = acc_f + shifted[k] * wc_ref[f, k]
        rows.append(acc_f + bc_ref[f])
    slab = jnp.concatenate(rows, axis=-1)                     # (B_pad, F*L)

    # ---- MaxPool1d(2) on the flattened stream -------------------------------
    # Pairwise max with a 1-lane shift, then even-lane compaction through the
    # MXU with an iota-built selection matrix: no minor-dim-2 reshape relayout
    # and no strided slices.  (Wraparound lane only feeds odd positions, which
    # the selection matrix discards.)
    nxt = jnp.concatenate([slab[:, 1:], slab[:, :1]], axis=-1)
    pair_max = jnp.maximum(slab, nxt)                         # (B_pad, F*L)
    rows_i = lax.broadcasted_iota(jnp.int32, (F * L, F * Lh), 0)
    cols_i = lax.broadcasted_iota(jnp.int32, (F * L, F * Lh), 1)
    sel = (rows_i == 2 * cols_i).astype(jnp.float32)
    pooled = jnp.dot(pair_max, sel,
                     preferred_element_type=jnp.float32)      # (B_pad, F*Lh)

    # ---- LSTM input projection, hoisted out of the recurrence ----------------
    # One matmul over all timesteps; stored into the (T, B_pad, 4H) scratch so
    # each recurrent step reads a single aligned tile.
    xs = jnp.concatenate(
        [pooled[:, t * d_in:(t + 1) * d_in] for t in range(T)], axis=0)
    gates_in = jnp.dot(xs.astype(jnp.bfloat16), wih_ref[...],
                       preferred_element_type=jnp.float32) + bl_ref[...]
    for t in range(T):                                        # aligned 8-row stores
        gates_scr[t] = gates_in[t * B_pad:(t + 1) * B_pad, :]

    # ---- LSTM recurrence ------------------------------------------------------
    # fori_loop keeps vreg live-ranges flat for long sequences; only h @ W_hh
    # remains on the serialized critical path (same RHS every step).
    # Gate columns are [i, f, o, g]: one sigmoid slab (i,f,o) + one tanh slab (g).
    # TODO(synk): on v6e/v7x, explicit W_hh MXU residency via
    # pltpu.matmul_push_rhs / matmul_acc_lhs / matmul_pop would remove the
    # per-step RHS push; left to the compiler here.
    def step(t, carry):
        h, c = carry
        g = gates_scr[t] + jnp.dot(h.astype(jnp.bfloat16), whh_ref[...],
                                   preferred_element_type=jnp.float32)
        sig = _sigmoid(g[:, :3 * H])                          # i | f | o (lane-aligned slices)
        i_g = sig[:, 0 * H:1 * H]
        f_g = sig[:, 1 * H:2 * H]
        o_g = sig[:, 2 * H:3 * H]
        g_g = jnp.tanh(g[:, 3 * H:])
        c = f_g * c + i_g * g_g
        h = o_g * jnp.tanh(c)
        return (h, c)

    h0 = jnp.zeros((B_pad, H), jnp.float32)
    c0 = jnp.zeros((B_pad, H), jnp.float32)
    h, _ = lax.fori_loop(0, T, step, (h0, c0))

    # ---- output head (lane-dense (B_pad, 128) store) --------------------------
    o_ref[...] = (jnp.dot(h.astype(jnp.bfloat16), wo_ref[...],
                          preferred_element_type=jnp.float32) + bo_ref[...])


# ----------------------------------------------------------------------------
# Wrapper
# ----------------------------------------------------------------------------
@functools.partial(jax.jit,
                   static_argnames=("kernel_size", "enc_in", "num_filters",
                                    "label_len", "hidden"))
def model_forward(inputs, params, *, kernel_size, enc_in, num_filters,
                  label_len, hidden):
    B, seq_len, enc = inputs.shape
    assert enc == enc_in
    assert kernel_size % 2 == 1, "only odd kernel_size ('same' symmetric pad)"
    assert seq_len % 2 == 0, "MaxPool1d(2) + .view regroup require even seq_len"
    assert label_len <= OUT_PAD
    assert params["w_hh"].shape[0] == hidden
    L = seq_len * enc_in
    d_in = enc_in * num_filters
    assert (num_filters * (L // 2)) % d_in == 0
    T = (num_filters * (L // 2)) // d_in                 # == seq_len // 2
    B_pad = max(SUBLANES, ((B + SUBLANES - 1) // SUBLANES) * SUBLANES)

    x_flat = inputs.reshape(B, L).astype(jnp.float32)    # == .view(B, 1, -1)
    if B_pad != B:                                       # pad batch to sublane tile
        x_flat = jnp.concatenate(
            [x_flat, jnp.zeros((B_pad - B, L), jnp.float32)], axis=0)

    # TODO(synk): for large batch on v7x, add a grid axis over batch tiles with
    # dimension_semantics=("parallel",) so both TensorCores are used.
    out_padded = pl.pallas_call(
        fused_forward_kernel,
        out_shape=jax.ShapeDtypeStruct((B_pad, OUT_PAD), jnp.float32),
        in_specs=[
            pl.BlockSpec(memory_space=pltpu.MemorySpace.VMEM),   # x
            pl.BlockSpec(memory_space=pltpu.MemorySpace.SMEM),   # conv_w
            pl.BlockSpec(memory_space=pltpu.MemorySpace.SMEM),   # conv_b
            pl.BlockSpec(memory_space=pltpu.MemorySpace.VMEM),   # w_ih
            pl.BlockSpec(memory_space=pltpu.MemorySpace.VMEM),   # w_hh
            pl.BlockSpec(memory_space=pltpu.MemorySpace.VMEM),   # b_lstm
            pl.BlockSpec(memory_space=pltpu.MemorySpace.VMEM),   # w_out
            pl.BlockSpec(memory_space=pltpu.MemorySpace.VMEM),   # b_out
        ],
        out_specs=pl.BlockSpec(memory_space=pltpu.MemorySpace.VMEM),
        scratch_shapes=[
            pltpu.VMEM((T, B_pad, 4 * hidden), jnp.float32),     # hoisted gates
        ],
    )(x_flat, params["conv_w"], params["conv_b"], params["w_ih"],
      params["w_hh"], params["b_lstm"], params["w_out"], params["b_out"])

    # h_n -> permute(1,0,2) -> Linear -> [:, -1:, :]
    return out_padded[:B, :label_len].reshape(B, 1, label_len)


def _reorder_gate_cols(w, hidden):
    """Torch gate order [i | f | g | o] -> kernel order [i | f | o | g]."""
    H = hidden
    return jnp.concatenate(
        [w[..., 0:2 * H], w[..., 3 * H:4 * H], w[..., 2 * H:3 * H]], axis=-1)


def make_kernel_params(conv_w, conv_b, w_ih, w_hh, b_lstm, w_out, b_out):
    """Pack params in the layout/dtype the fused kernel expects.

    Inputs use torch layouts (already transposed to (in, 4H) / (H, label_len)):
      * gate columns are permuted [i,f,g,o] -> [i,f,o,g] so the kernel applies
        one sigmoid slab (i,f,o) and one tanh slab (g);
      * matmul weights go to bf16 (f32 accumulation in-kernel);
      * the output head is zero-padded to OUT_PAD lanes for a lane-dense store;
      * conv weights/bias stay f32 and live in SMEM (scalar-broadcast FMAs).
    """
    hidden = w_hh.shape[0]
    label_len = w_out.shape[1]
    w_out_p = jnp.zeros((hidden, OUT_PAD), jnp.float32).at[:, :label_len].set(w_out)
    b_out_p = jnp.zeros((1, OUT_PAD), jnp.float32).at[:, :label_len].set(
        b_out.reshape(1, -1))
    return {
        "conv_w": conv_w.astype(jnp.float32),
        "conv_b": conv_b.reshape(-1).astype(jnp.float32),
        "w_ih": _reorder_gate_cols(w_ih, hidden).astype(jnp.bfloat16),
        "w_hh": _reorder_gate_cols(w_hh, hidden).astype(jnp.bfloat16),
        "b_lstm": _reorder_gate_cols(b_lstm.reshape(1, -1), hidden).astype(jnp.float32),
        "w_out": w_out_p.astype(jnp.bfloat16),
        "b_out": b_out_p.astype(jnp.float32),
    }


# ----------------------------------------------------------------------------
# Pure-JAX reference (numerical sanity check, torch gate order [i,f,g,o])
# ----------------------------------------------------------------------------
def reference_forward(inputs, conv_w, conv_b, w_ih, w_hh, b_lstm, w_out, b_out,
                      *, label_len, hidden):
    B, seq_len, enc_in = inputs.shape
    F, K = conv_w.shape
    L = seq_len * enc_in
    pad = (K - 1) // 2
    xp = jnp.pad(inputs.reshape(B, L), ((0, 0), (pad, pad)))
    windows = jnp.stack([xp[:, k:k + L] for k in range(K)], axis=-1)   # (B, L, K)
    conv = jnp.einsum("blk,fk->bfl", windows, conv_w,
                      precision=jax.lax.Precision.HIGHEST)
    conv = conv + conv_b[None, :, None]
    pooled = jnp.max(conv.reshape(B, F, L // 2, 2), axis=-1)
    d_in = w_ih.shape[0]
    T = (F * (L // 2)) // d_in
    seq = pooled.reshape(B, T, d_in)

    def step(carry, x_t):
        h, c = carry
        g = x_t @ w_ih + h @ w_hh + b_lstm
        H = hidden
        i_g = jax.nn.sigmoid(g[:, 0 * H:1 * H])
        f_g = jax.nn.sigmoid(g[:, 1 * H:2 * H])
        g_g = jnp.tanh(g[:, 2 * H:3 * H])
        o_g = jax.nn.sigmoid(g[:, 3 * H:4 * H])
        c = f_g * c + i_g * g_g
        h = o_g * jnp.tanh(c)
        return (h, c), None

    h0 = jnp.zeros((B, hidden), jnp.float32)
    c0 = jnp.zeros((B, hidden), jnp.float32)
    (h, _), _ = jax.lax.scan(step, (h0, c0), jnp.transpose(seq, (1, 0, 2)))
    out = h @ w_out + b_out
    return out.reshape(B, 1, label_len)


# ----------------------------------------------------------------------------
if __name__ == "__main__":
    # Small config consistent with the module
    B, seq_len, enc_in = 2, 8, 4
    num_filters, kernel_size = 4, 3
    label_len, hidden = 4, 256
    d_in = enc_in * num_filters

    key = jax.random.PRNGKey(0)
    k = jax.random.split(key, 9)
    s = 1.0 / math.sqrt(hidden)

    conv_w = jax.random.normal(k[0], (num_filters, kernel_size), jnp.float32) * 0.3
    conv_b = jax.random.normal(k[1], (num_filters,), jnp.float32) * 0.1
    w_ih = jax.random.normal(k[2], (d_in, 4 * hidden), jnp.float32) * s
    w_hh = jax.random.normal(k[3], (hidden, 4 * hidden), jnp.float32) * s
    b_lstm = (jax.random.normal(k[4], (1, 4 * hidden), jnp.float32) * s
              + jax.random.normal(k[5], (1, 4 * hidden), jnp.float32) * s)
    w_out = jax.random.normal(k[6], (hidden, label_len), jnp.float32) * s
    b_out = jax.random.normal(k[7], (1, label_len), jnp.float32) * s

    inputs = jax.random.normal(k[8], (B, seq_len, enc_in), jnp.float32)
    # Model.forward(inputs, _x, y, _y): the extra args are unused by the forward.

    params = make_kernel_params(conv_w, conv_b, w_ih, w_hh, b_lstm, w_out, b_out)

    out = model_forward(inputs, params, kernel_size=kernel_size, enc_in=enc_in,
                        num_filters=num_filters, label_len=label_len,
                        hidden=hidden)
    out = jax.block_until_ready(out)

    # Reference uses the same bf16-rounded weights in f32 math (original gate
    # order), so only the in-kernel bf16 activation rounding differs.
    rnd = lambda a: a.astype(jnp.bfloat16).astype(jnp.float32)
    ref = reference_forward(inputs, conv_w, conv_b, rnd(w_ih), rnd(w_hh),
                            b_lstm, rnd(w_out), b_out,
                            label_len=label_len, hidden=hidden)

    assert out.shape == (B, 1, label_len), out.shape
    assert jnp.allclose(out, ref, rtol=2e-2, atol=2e-2), (out, ref)
    print("KERNEL_OK")
</pallas_src>

<mosaic_0001>
module attributes {stable_mosaic.version = 11 : i64} {
  func.func @fused_forward_kernel(%arg0: memref<8x32xf32, #tpu.memory_space<vmem>>, %arg1: memref<4x3xf32, #tpu.memory_space<smem>>, %arg2: memref<4xf32, #tpu.memory_space<smem>>, %arg3: memref<16x1024xbf16, #tpu.memory_space<vmem>>, %arg4: memref<256x1024xbf16, #tpu.memory_space<vmem>>, %arg5: memref<1x1024xf32, #tpu.memory_space<vmem>>, %arg6: memref<256x128xbf16, #tpu.memory_space<vmem>>, %arg7: memref<1x128xf32, #tpu.memory_space<vmem>>, %arg8: memref<8x128xf32, #tpu.memory_space<vmem>>, %arg9: memref<4x8x1024xf32, #tpu.memory_space<vmem>>) attributes {dimension_semantics = [], scalar_prefetch = 0 : i64, scratch_operands = 1 : i64, tpu.core_type = #tpu.core_type<tc>} {
    %c0 = arith.constant 0 : index
    %c0_0 = arith.constant 0 : index
    %0 = vector.load %arg0[%c0, %c0_0] : memref<8x32xf32, #tpu.memory_space<vmem>>, vector<8x32xf32>
    %cst = arith.constant 0.000000e+00 : f32
    %1 = vector.broadcast %cst : f32 to vector<8x1xf32>
    %2 = vector.extract_strided_slice %0 {offsets = [0, 0], sizes = [8, 31], strides = [1, 1]} : vector<8x32xf32> to vector<8x31xf32>
    %3 = tpu.concatenate %1, %2 in 1 : vector<8x1xf32>, vector<8x31xf32> -> vector<8x32xf32>
    %4 = vector.extract_strided_slice %0 {offsets = [0, 1], sizes = [8, 31], strides = [1, 1]} : vector<8x32xf32> to vector<8x31xf32>
    %cst_1 = arith.constant 0.000000e+00 : f32
    %5 = vector.broadcast %cst_1 : f32 to vector<8x1xf32>
    %6 = tpu.concatenate %4, %5 in 1 : vector<8x31xf32>, vector<8x1xf32> -> vector<8x32xf32>
    %c0_2 = arith.constant 0 : index
    %c0_3 = arith.constant 0 : index
    %7 = memref.load %arg1[%c0_2, %c0_3] : memref<4x3xf32, #tpu.memory_space<smem>>
    %8 = vector.broadcast %7 : f32 to vector<8x32xf32>
    %9 = arith.mulf %3, %8 : vector<8x32xf32>
    %c0_4 = arith.constant 0 : index
    %c1 = arith.constant 1 : index
    %10 = memref.load %arg1[%c0_4, %c1] : memref<4x3xf32, #tpu.memory_space<smem>>
    %11 = vector.broadcast %10 : f32 to vector<8x32xf32>
    %12 = arith.mulf %0, %11 : vector<8x32xf32>
    %13 = arith.addf %9, %12 : vector<8x32xf32>
    %c0_5 = arith.constant 0 : index
    %c2 = arith.constant 2 : index
    %14 = memref.load %arg1[%c0_5, %c2] : memref<4x3xf32, #tpu.memory_space<smem>>
    %15 = vector.broadcast %14 : f32 to vector<8x32xf32>
    %16 = arith.mulf %6, %15 : vector<8x32xf32>
    %17 = arith.addf %13, %16 : vector<8x32xf32>
    %c0_6 = arith.constant 0 : index
    %18 = memref.load %arg2[%c0_6] : memref<4xf32, #tpu.memory_space<smem>>
    %19 = vector.broadcast %18 : f32 to vector<8x32xf32>
    %20 = arith.addf %17, %19 : vector<8x32xf32>
    %c1_7 = arith.constant 1 : index
    %c0_8 = arith.constant 0 : index
    %21 = memref.load %arg1[%c1_7, %c0_8] : memref<4x3xf32, #tpu.memory_space<smem>>
    %22 = vector.broadcast %21 : f32 to vector<8x32xf32>
    %23 = arith.mulf %3, %22 : vector<8x32xf32>
    %c1_9 = arith.constant 1 : index
    %c1_10 = arith.constant 1 : index
    %24 = memref.load %arg1[%c1_9, %c1_10] : memref<4x3xf32, #tpu.memory_space<smem>>
    %25 = vector.broadcast %24 : f32 to vector<8x32xf32>
    %26 = arith.mulf %0, %25 : vector<8x32xf32>
    %27 = arith.addf %23, %26 : vector<8x32xf32>
    %c1_11 = arith.constant 1 : index
    %c2_12 = arith.constant 2 : index
    %28 = memref.load %arg1[%c1_11, %c2_12] : memref<4x3xf32, #tpu.memory_space<smem>>
    %29 = vector.broadcast %28 : f32 to vector<8x32xf32>
    %30 = arith.mulf %6, %29 : vector<8x32xf32>
    %31 = arith.addf %27, %30 : vector<8x32xf32>
    %c1_13 = arith.constant 1 : index
    %32 = memref.load %arg2[%c1_13] : memref<4xf32, #tpu.memory_space<smem>>
    %33 = vector.broadcast %32 : f32 to vector<8x32xf32>
    %34 = arith.addf %31, %33 : vector<8x32xf32>
    %c2_14 = arith.constant 2 : index
    %c0_15 = arith.constant 0 : index
    %35 = memref.load %arg1[%c2_14, %c0_15] : memref<4x3xf32, #tpu.memory_space<smem>>
    %36 = vector.broadcast %35 : f32 to vector<8x32xf32>
    %37 = arith.mulf %3, %36 : vector<8x32xf32>
    %c2_16 = arith.constant 2 : index
    %c1_17 = arith.constant 1 : index
    %38 = memref.load %arg1[%c2_16, %c1_17] : memref<4x3xf32, #tpu.memory_space<smem>>
    %39 = vector.broadcast %38 : f32 to vector<8x32xf32>
    %40 = arith.mulf %0, %39 : vector<8x32xf32>
    %41 = arith.addf %37, %40 : vector<8x32xf32>
    %c2_18 = arith.constant 2 : index
    %c2_19 = arith.constant 2 : index
    %42 = memref.load %arg1[%c2_18, %c2_19] : memref<4x3xf32, #tpu.memory_space<smem>>
    %43 = vector.broadcast %42 : f32 to vector<8x32xf32>
    %44 = arith.mulf %6, %43 : vector<8x32xf32>
    %45 = arith.addf %41, %44 : vector<8x32xf32>
    %c2_20 = arith.constant 2 : index
    %46 = memref.load %arg2[%c2_20] : memref<4xf32, #tpu.memory_space<smem>>
    %47 = vector.broadcast %46 : f32 to vector<8x32xf32>
    %48 = arith.addf %45, %47 : vector<8x32xf32>
    %c3 = arith.constant 3 : index
    %c0_21 = arith.constant 0 : index
    %49 = memref.load %arg1[%c3, %c0_21] : memref<4x3xf32, #tpu.memory_space<smem>>
    %50 = vector.broadcast %49 : f32 to vector<8x32xf32>
    %51 = arith.mulf %3, %50 : vector<8x32xf32>
    %c3_22 = arith.constant 3 : index
    %c1_23 = arith.constant 1 : index
    %52 = memref.load %arg1[%c3_22, %c1_23] : memref<4x3xf32, #tpu.memory_space<smem>>
    %53 = vector.broadcast %52 : f32 to vector<8x32xf32>
    %54 = arith.mulf %0, %53 : vector<8x32xf32>
    %55 = arith.addf %51, %54 : vector<8x32xf32>
    %c3_24 = arith.constant 3 : index
    %c2_25 = arith.constant 2 : index
    %56 = memref.load %arg1[%c3_24, %c2_25] : memref<4x3xf32, #tpu.memory_space<smem>>
    %57 = vector.broadcast %56 : f32 to vector<8x32xf32>
    %58 = arith.mulf %6, %57 : vector<8x32xf32>
    %59 = arith.addf %55, %58 : vector<8x32xf32>
    %c3_26 = arith.constant 3 : index
    %60 = memref.load %arg2[%c3_26] : memref<4xf32, #tpu.memory_space<smem>>
    %61 = vector.broadcast %60 : f32 to vector<8x32xf32>
    %62 = arith.addf %59, %61 : vector<8x32xf32>
    %63 = tpu.concatenate %20, %34, %48, %62 in 1 : vector<8x32xf32>, vector<8x32xf32>, vector<8x32xf32>, vector<8x32xf32> -> vector<8x128xf32>
    %64 = vector.extract_strided_slice %63 {offsets = [0, 1], sizes = [8, 127], strides = [1, 1]} : vector<8x128xf32> to vector<8x127xf32>
    %65 = vector.extract_strided_slice %63 {offsets = [0, 0], sizes = [8, 1], strides = [1, 1]} : vector<8x128xf32> to vector<8x1xf32>
    %66 = tpu.concatenate %64, %65 in 1 : vector<8x127xf32>, vector<8x1xf32> -> vector<8x128xf32>
    %67 = arith.maximumf %63, %66 : vector<8x128xf32>
    %68 = tpu.iota {dimensions = array<i32: 0>} : vector<128x64xi32>
    %69 = tpu.iota {dimensions = array<i32: 1>} : vector<128x64xi32>
    %c2_i32 = arith.constant 2 : i32
    %70 = vector.broadcast %c2_i32 : i32 to vector<128x64xi32>
    %71 = arith.muli %70, %69 : vector<128x64xi32>
    %72 = arith.cmpi eq, %68, %71 : vector<128x64xi32>
    %73 = arith.extui %72 : vector<128x64xi1> to vector<128x64xi32>
    %74 = arith.sitofp %73 : vector<128x64xi32> to vector<128x64xf32>
    %cst_27 = arith.constant dense<0.000000e+00> : vector<8x64xf32>
    %75 = tpu.matmul %67, %74, %cst_27 {dimension_numbers = #tpu.dot_dimension_numbers<[1], [0], [0], [1], [0, 0, 1, 1], [], []>} : vector<8x128xf32>, vector<128x64xf32>, vector<8x64xf32> -> vector<8x64xf32>
    %76 = vector.extract_strided_slice %75 {offsets = [0, 0], sizes = [8, 16], strides = [1, 1]} : vector<8x64xf32> to vector<8x16xf32>
    %77 = vector.extract_strided_slice %75 {offsets = [0, 16], sizes = [8, 16], strides = [1, 1]} : vector<8x64xf32> to vector<8x16xf32>
    %78 = vector.extract_strided_slice %75 {offsets = [0, 32], sizes = [8, 16], strides = [1, 1]} : vector<8x64xf32> to vector<8x16xf32>
    %79 = vector.extract_strided_slice %75 {offsets = [0, 48], sizes = [8, 16], strides = [1, 1]} : vector<8x64xf32> to vector<8x16xf32>
    %80 = tpu.concatenate %76, %77, %78, %79 in 0 : vector<8x16xf32>, vector<8x16xf32>, vector<8x16xf32>, vector<8x16xf32> -> vector<32x16xf32>
    %81 = arith.truncf %80 : vector<32x16xf32> to vector<32x16xbf16>
    %c0_28 = arith.constant 0 : index
    %c0_29 = arith.constant 0 : index
    %82 = vector.load %arg3[%c0_28, %c0_29] : memref<16x1024xbf16, #tpu.memory_space<vmem>>, vector<16x1024xbf16>
    %cst_30 = arith.constant dense<0.000000e+00> : vector<32x1024xf32>
    %83 = tpu.matmul %81, %82, %cst_30 {dimension_numbers = #tpu.dot_dimension_numbers<[1], [0], [0], [1], [0, 0, 1, 1], [], []>} : vector<32x16xbf16>, vector<16x1024xbf16>, vector<32x1024xf32> -> vector<32x1024xf32>
    %c0_31 = arith.constant 0 : index
    %c0_32 = arith.constant 0 : index
    %84 = vector.load %arg5[%c0_31, %c0_32] : memref<1x1024xf32, #tpu.memory_space<vmem>>, vector<1x1024xf32>
    %85 = vector.broadcast %84 : vector<1x1024xf32> to vector<32x1024xf32>
    %86 = arith.addf %83, %85 : vector<32x1024xf32>
    %87 = vector.extract_strided_slice %86 {offsets = [0, 0], sizes = [8, 1024], strides = [1, 1]} : vector<32x1024xf32> to vector<8x1024xf32>
    %c0_33 = arith.constant 0 : index
    %c0_34 = arith.constant 0 : index
    %c0_35 = arith.constant 0 : index
    %88 = vector.load %arg9[%c0_33, %c0_34, %c0_35] : memref<4x8x1024xf32, #tpu.memory_space<vmem>>, vector<1x8x1024xf32>
    %89 = vector.shape_cast %88 : vector<1x8x1024xf32> to vector<8x1024xf32>
    %90 = vector.shape_cast %87 : vector<8x1024xf32> to vector<1x8x1024xf32>
    tpu.vector_store %arg9[%c0_33, %c0_34, %c0_35], %90 {strides = array<i32>} : memref<4x8x1024xf32, #tpu.memory_space<vmem>>, vector<1x8x1024xf32>,
    %91 = vector.extract_strided_slice %86 {offsets = [8, 0], sizes = [8, 1024], strides = [1, 1]} : vector<32x1024xf32> to vector<8x1024xf32>
    %c1_36 = arith.constant 1 : index
    %c0_37 = arith.constant 0 : index
    %c0_38 = arith.constant 0 : index
    %92 = vector.load %arg9[%c1_36, %c0_37, %c0_38] : memref<4x8x1024xf32, #tpu.memory_space<vmem>>, vector<1x8x1024xf32>
    %93 = vector.shape_cast %92 : vector<1x8x1024xf32> to vector<8x1024xf32>
    %94 = vector.shape_cast %91 : vector<8x1024xf32> to vector<1x8x1024xf32>
    tpu.vector_store %arg9[%c1_36, %c0_37, %c0_38], %94 {strides = array<i32>} : memref<4x8x1024xf32, #tpu.memory_space<vmem>>, vector<1x8x1024xf32>,
    %95 = vector.extract_strided_slice %86 {offsets = [16, 0], sizes = [8, 1024], strides = [1, 1]} : vector<32x1024xf32> to vector<8x1024xf32>
    %c2_39 = arith.constant 2 : index
    %c0_40 = arith.constant 0 : index
    %c0_41 = arith.constant 0 : index
    %96 = vector.load %arg9[%c2_39, %c0_40, %c0_41] : memref<4x8x1024xf32, #tpu.memory_space<vmem>>, vector<1x8x1024xf32>
    %97 = vector.shape_cast %96 : vector<1x8x1024xf32> to vector<8x1024xf32>
    %98 = vector.shape_cast %95 : vector<8x1024xf32> to vector<1x8x1024xf32>
    tpu.vector_store %arg9[%c2_39, %c0_40, %c0_41], %98 {strides = array<i32>} : memref<4x8x1024xf32, #tpu.memory_space<vmem>>, vector<1x8x1024xf32>,
    %99 = vector.extract_strided_slice %86 {offsets = [24, 0], sizes = [8, 1024], strides = [1, 1]} : vector<32x1024xf32> to vector<8x1024xf32>
    %c3_42 = arith.constant 3 : index
    %c0_43 = arith.constant 0 : index
    %c0_44 = arith.constant 0 : index
    %100 = vector.load %arg9[%c3_42, %c0_43, %c0_44] : memref<4x8x1024xf32, #tpu.memory_space<vmem>>, vector<1x8x1024xf32>
    %101 = vector.shape_cast %100 : vector<1x8x1024xf32> to vector<8x1024xf32>
    %102 = vector.shape_cast %99 : vector<8x1024xf32> to vector<1x8x1024xf32>
    tpu.vector_store %arg9[%c3_42, %c0_43, %c0_44], %102 {strides = array<i32>} : memref<4x8x1024xf32, #tpu.memory_space<vmem>>, vector<1x8x1024xf32>,
    %cst_45 = arith.constant 0.000000e+00 : f32
    %103 = vector.broadcast %cst_45 : f32 to vector<8x256xf32>
    %cst_46 = arith.constant 0.000000e+00 : f32
    %104 = vector.broadcast %cst_46 : f32 to vector<8x256xf32>
    %c0_i32 = arith.constant 0 : i32
    %c4_i32 = arith.constant 4 : i32
    %105 = arith.addi %c0_i32, %c4_i32 : i32
    %c1_i32 = arith.constant 1 : i32
    %106:2 = scf.for %arg10 = %c0_i32 to %105 step %c1_i32 iter_args(%arg11 = %103, %arg12 = %104) -> (vector<8x256xf32>, vector<8x256xf32>)  : i32 {
      %114 = arith.index_cast %arg10 : i32 to index
      %c0_55 = arith.constant 0 : index
      %c0_56 = arith.constant 0 : index
      %115 = vector.load %arg9[%114, %c0_55, %c0_56] : memref<4x8x1024xf32, #tpu.memory_space<vmem>>, vector<1x8x1024xf32>
      %116 = vector.shape_cast %115 : vector<1x8x1024xf32> to vector<8x1024xf32>
      %117 = arith.truncf %arg11 : vector<8x256xf32> to vector<8x256xbf16>
      %c0_57 = arith.constant 0 : index
      %c0_58 = arith.constant 0 : index
      %118 = vector.load %arg4[%c0_57, %c0_58] : memref<256x1024xbf16, #tpu.memory_space<vmem>>, vector<256x1024xbf16>
      %cst_59 = arith.constant dense<0.000000e+00> : vector<8x1024xf32>
      %119 = tpu.matmul %117, %118, %cst_59 {dimension_numbers = #tpu.dot_dimension_numbers<[1], [0], [0], [1], [0, 0, 1, 1], [], []>} : vector<8x256xbf16>, vector<256x1024xbf16>, vector<8x1024xf32> -> vector<8x1024xf32>
      %120 = arith.addf %116, %119 : vector<8x1024xf32>
      %121 = vector.extract_strided_slice %120 {offsets = [0, 0], sizes = [8, 768], strides = [1, 1]} : vector<8x1024xf32> to vector<8x768xf32>
      %cst_60 = arith.constant 5.000000e-01 : f32
      %122 = vector.broadcast %cst_60 : f32 to vector<8x768xf32>
      %123 = arith.mulf %122, %121 : vector<8x768xf32>
      %124 = math.tanh %123 : vector<8x768xf32>
      %cst_61 = arith.constant 1.000000e+00 : f32
      %125 = vector.broadcast %cst_61 : f32 to vector<8x768xf32>
      %126 = arith.addf %124, %125 : vector<8x768xf32>
      %cst_62 = arith.constant 5.000000e-01 : f32
      %127 = vector.broadcast %cst_62 : f32 to vector<8x768xf32>
      %128 = arith.mulf %127, %126 : vector<8x768xf32>
      %129 = vector.extract_strided_slice %128 {offsets = [0, 0], sizes = [8, 256], strides = [1, 1]} : vector<8x768xf32> to vector<8x256xf32>
      %130 = vector.extract_strided_slice %128 {offsets = [0, 256], sizes = [8, 256], strides = [1, 1]} : vector<8x768xf32> to vector<8x256xf32>
      %131 = vector.extract_strided_slice %128 {offsets = [0, 512], sizes = [8, 256], strides = [1, 1]} : vector<8x768xf32> to vector<8x256xf32>
      %132 = vector.extract_strided_slice %120 {offsets = [0, 768], sizes = [8, 256], strides = [1, 1]} : vector<8x1024xf32> to vector<8x256xf32>
      %133 = math.tanh %132 : vector<8x256xf32>
      %134 = arith.mulf %130, %arg12 : vector<8x256xf32>
      %135 = arith.mulf %129, %133 : vector<8x256xf32>
      %136 = arith.addf %134, %135 : vector<8x256xf32>
      %137 = math.tanh %136 : vector<8x256xf32>
      %138 = arith.mulf %131, %137 : vector<8x256xf32>
      scf.yield %138, %136 : vector<8x256xf32>, vector<8x256xf32>
    }
    %c4_i32_47 = arith.constant 4 : i32
    %107 = arith.truncf %106#0 : vector<8x256xf32> to vector<8x256xbf16>
    %c0_48 = arith.constant 0 : index
    %c0_49 = arith.constant 0 : index
    %108 = vector.load %arg6[%c0_48, %c0_49] : memref<256x128xbf16, #tpu.memory_space<vmem>>, vector<256x128xbf16>
    %cst_50 = arith.constant dense<0.000000e+00> : vector<8x128xf32>
    %109 = tpu.matmul %107, %108, %cst_50 {dimension_numbers = #tpu.dot_dimension_numbers<[1], [0], [0], [1], [0, 0, 1, 1], [], []>} : vector<8x256xbf16>, vector<256x128xbf16>, vector<8x128xf32> -> vector<8x128xf32>
    %c0_51 = arith.constant 0 : index
    %c0_52 = arith.constant 0 : index
    %110 = vector.load %arg7[%c0_51, %c0_52] : memref<1x128xf32, #tpu.memory_space<vmem>>, vector<1x128xf32>
    %111 = vector.broadcast %110 : vector<1x128xf32> to vector<8x128xf32>
    %112 = arith.addf %109, %111 : vector<8x128xf32>
    %c0_53 = arith.constant 0 : index
    %c0_54 = arith.constant 0 : index
    %113 = vector.load %arg8[%c0_53, %c0_54] : memref<8x128xf32, #tpu.memory_space<vmem>>, vector<8x128xf32>
    tpu.vector_store %arg8[%c0_53, %c0_54], %112 {strides = array<i32>} : memref<8x128xf32, #tpu.memory_space<vmem>>, vector<8x128xf32>,
    return
  }
}

</mosaic_0001>

<llo_original>
// kernel: model_forward.1
$region0: #{model_forward.1}
  #allocation0 [shape = 'u32[]', space=smem, size = 0x4, offset = 0x4, fixed_abs, tag = 'smem constant byte address 0x4 - core index']
  #allocation1 [shape = 'u32[72,128]{1,0:T(1,128)}', space=vmem, size = 0x9000, scoped, tag = 'internal scratch']
  #allocation2 [shape = 'f32[4,8,1024]{2,1,0:T(8,128)}', space=vmem, size = 0x20000, scoped, tag = 'scratch operand']
  %s0 = inlined_call_operand.vmem [shape: f32[8,32], index: 0, kind: input, shape index: {}]
  %s1 = inlined_call_operand.vmem [shape: f32[4,3], index: 1, kind: input, shape index: {}]
  %s2 = inlined_call_operand.vmem [shape: f32[4], index: 2, kind: input, shape index: {}]
  %s3 = inlined_call_operand.hbm [shape: bf16[16,1024], index: 3, kind: input, shape index: {}]
  %s4 = inlined_call_operand.hbm [shape: bf16[256,1024], index: 4, kind: input, shape index: {}]
  %s5 = inlined_call_operand.vmem [shape: f32[1,1024], index: 5, kind: input, shape index: {}]
  %s6 = inlined_call_operand.hbm [shape: bf16[256,128], index: 6, kind: input, shape index: {}]
  %s7 = inlined_call_operand.vmem [shape: f32[1,128], index: 7, kind: input, shape index: {}]
  %s8 = inlined_call_operand.vmem [shape: f32[8,128], index: 8, kind: output, shape index: {}]
  %s9 = sld [smem:[#allocation0]]
  $region69: #{model_forward.1} parent=0
    _
  %s11 = ssub.s32 1, %s9
  %s12 = scalar_select 0, %s11, %s9
  $region1: #{model_forward.1} parent=0
    #allocation3 [shape = 'u8[2048]{0}', space=smem, size = 0x800, scoped, tag = 'input window, operand 1, single buffered']
    #allocation4 [shape = 's32[1]{0}', space=sflag, size = 0x4, scoped, tag = 'scoped memory for model_forward.1']
    #allocation5 [shape = 's32[1]{0}', space=sflag, size = 0x4, scoped, tag = 'scoped memory for model_forward.1']
    #allocation6 [shape = 'u8[512]{0}', space=smem, size = 0x200, scoped, tag = 'input window, operand 2, single buffered']
    #allocation7 [shape = 's32[1]{0}', space=sflag, size = 0x4, scoped, tag = 'scoped memory for model_forward.1']
    #allocation8 [shape = 'u8[32768]{0}', space=vmem, size = 0x8000, scoped, tag = 'input window, operand 3, single buffered']
    #allocation9 [shape = 'u8[524288]{0}', space=vmem, size = 0x80000, scoped, tag = 'input window, operand 4, single buffered']
    #allocation10 [shape = 's32[1]{0}', space=sflag, size = 0x4, scoped, tag = 'scoped memory for model_forward.1']
    #allocation11 [shape = 'u8[65536]{0}', space=vmem, size = 0x10000, scoped, tag = 'input window, operand 6, single buffered']
    %13 = vsyncpa [#allocation5], 0
    %14 = vsyncpa [#allocation7], 0
    %15 = vsyncpa [#allocation4], 0
    %16 = vsyncpa [#allocation10], 0
    // Predicated region
    $region2: #{model_forward.1} parent=1 // pred_check
      _
    $region3: #{model_forward.1} parent=1 // pred_check_branch
      %18 = sbr.rel (0) target = $region5
    $region4: #{model_forward.1} parent=1 // pred_region
      _
    $region5: #{model_forward.1} parent=1 // pred_fallthru
      _
    // Predicated region
    $region6: #{model_forward.1} parent=1 // pred_check
      _
    $region7: #{model_forward.1} parent=1 // pred_check_branch
      %20 = sbr.rel (0) target = $region9
    $region8: #{model_forward.1} parent=1 // pred_region
      %22 = vsyncadd [#allocation5], 0
      %s24 = sshll.u32 %s1, 4
      %s25 = int_to_ptr.vmem [resolvable:$true] %s24
      %27 = dma.vmem_to_smem %s25, 64, [#allocation3], [#allocation5]
    $region9: #{model_forward.1} parent=1 // pred_fallthru
      _
    // Predicated region
    $region10: #{model_forward.1} parent=1 // pred_check
      _
    $region11: #{model_forward.1} parent=1 // pred_check_branch
      %29 = sbr.rel (0) target = $region13
    $region12: #{model_forward.1} parent=1 // pred_region
      %31 = vsyncadd [#allocation7], 0
      %s33 = sshll.u32 %s2, 4
      %s34 = int_to_ptr.vmem [resolvable:$true] %s33
      %36 = dma.vmem_to_smem %s34, 16, [#allocation6], [#allocation7]
    $region13: #{model_forward.1} parent=1 // pred_fallthru
      _
    // Predicated region
    $region14: #{model_forward.1} parent=1 // pred_check
      _
    $region15: #{model_forward.1} parent=1 // pred_check_branch
      %38 = sbr.rel (0) target = $region17
    $region16: #{model_forward.1} parent=1 // pred_region
      %40 = vsyncadd [#allocation4], 0
      %s41 = sshll.u32 %s3, 4
      %s42 = int_to_ptr.hbm [resolvable:$true] %s41
      %s43 = sshll.u32 [#allocation8], 4
      %s44 = int_to_ptr.vmem [resolvable:$true] %s43
      %49 = dma.hbm_to_vmem [thread:$0]  %s42, 1024, %s44, [#allocation4], 512, 512, 32
    $region17: #{model_forward.1} parent=1 // pred_fallthru
      _
    // Predicated region
    $region18: #{model_forward.1} parent=1 // pred_check
      _
    $region19: #{model_forward.1} parent=1 // pred_check_branch
      %51 = sbr.rel (0) target = $region21
    $region20: #{model_forward.1} parent=1 // pred_region
      %53 = vsyncadd [#allocation10], 0
      %s54 = sshll.u32 %s4, 4
      %s55 = int_to_ptr.hbm [resolvable:$true] %s54
      %s56 = sshll.u32 [#allocation9], 4
      %s57 = int_to_ptr.vmem [resolvable:$true] %s56
      %62 = dma.hbm_to_vmem [thread:$0]  %s55, 16384, %s57, [#allocation10], 512, 512, 32
    $region21: #{model_forward.1} parent=1 // pred_fallthru
      _
    // Predicated region
    $region22: #{model_forward.1} parent=1 // pred_check
      _
    $region23: #{model_forward.1} parent=1 // pred_check_branch
      %64 = sbr.rel (0) target = $region25
    $region24: #{model_forward.1} parent=1 // pred_region
      _
    $region25: #{model_forward.1} parent=1 // pred_fallthru
      _
    // Predicated region
    $region26: #{model_forward.1} parent=1 // pred_check
      _
    $region27: #{model_forward.1} parent=1 // pred_check_branch
      %66 = sbr.rel (0) target = $region29
    $region28: #{model_forward.1} parent=1 // pred_region
      %68 = vsyncadd [#allocation10], 0
      %s69 = sshll.u32 %s6, 4
      %s70 = int_to_ptr.hbm [resolvable:$true] %s69
      %s71 = sshll.u32 [#allocation11], 4
      %s72 = int_to_ptr.vmem [resolvable:$true] %s71
      %77 = dma.hbm_to_vmem [thread:$0]  %s70, 2048, %s72, [#allocation10], 64, 64, 4
    $region29: #{model_forward.1} parent=1 // pred_fallthru
      _
    // Predicated region
    $region30: #{model_forward.1} parent=1 // pred_check
      _
    $region31: #{model_forward.1} parent=1 // pred_check_branch
      %79 = sbr.rel (0) target = $region33
    $region32: #{model_forward.1} parent=1 // pred_region
      _
    $region33: #{model_forward.1} parent=1 // pred_fallthru
      _
    // Predicated region
    $region34: #{model_forward.1} parent=1 // pred_check
      _
    $region35: #{model_forward.1} parent=1 // pred_check_branch
      %81 = sbr.rel (0) target = $region37
    $region36: #{model_forward.1} parent=1 // pred_region
      %83 = dma.done [#allocation5], 64
    $region37: #{model_forward.1} parent=1 // pred_fallthru
      _
    // Predicated region
    $region38: #{model_forward.1} parent=1 // pred_check
      _
    $region39: #{model_forward.1} parent=1 // pred_check_branch
      %85 = sbr.rel (0) target = $region41
    $region40: #{model_forward.1} parent=1 // pred_region
      %87 = dma.done [#allocation7], 16
    $region41: #{model_forward.1} parent=1 // pred_fallthru
      _
    // Predicated region
    $region42: #{model_forward.1} parent=1 // pred_check
      _
    $region43: #{model_forward.1} parent=1 // pred_check_branch
      %89 = sbr.rel (0) target = $region45
    $region44: #{model_forward.1} parent=1 // pred_region
      %91 = dma.done [#allocation4], 1024
    $region45: #{model_forward.1} parent=1 // pred_fallthru
      _
    // Predicated region
    $region46: #{model_forward.1} parent=1 // pred_check
      _
    $region47: #{model_forward.1} parent=1 // pred_check_branch
      %93 = sbr.rel (0) target = $region49
    $region48: #{model_forward.1} parent=1 // pred_region
      %95 = dma.done [#allocation10], 16384
    $region49: #{model_forward.1} parent=1 // pred_fallthru
      _
    // Predicated region
    $region50: #{model_forward.1} parent=1 // pred_check
      _
    $region51: #{model_forward.1} parent=1 // pred_check_branch
      %97 = sbr.rel (0) target = $region53
    $region52: #{model_forward.1} parent=1 // pred_region
      %99 = dma.done [#allocation10], 2048
    $region53: #{model_forward.1} parent=1 // pred_fallthru
      _
    %100 = sfence
    %v102 = vld [vmem:[%s0] sm:$0xff]
    %104 = vrot.lane.b32.xlu0 %v102, 1
    %v105 = vpop.permute.xlu0 %104
    %vm107 = vcmask 7168
    %v108 = vsel %vm107, 0.0, %v105
    %109 = vrot.lane.b32.xlu0 %v102, 127
    %v110 = vpop.permute.xlu0 %109
    %vm112 = vcmask 252928
    %v113 = vsel %vm112, %v110, 0.0
    %s114 = sld [smem:[#allocation3]]
    %v115 = vstv %s114
    %v116 = vmul.f32 %v108, %v115
    %s117 = sld [smem:[#allocation3 + $0x1]]
    %v118 = vstv %s117
    %v119 = vmul.f32 %v102, %v118
    %v120 = vadd.f32 %v116, %v119
    %s121 = sld [smem:[#allocation3 + $0x2]]
    %v122 = vstv %s121
    %v123 = vmul.f32 %v113, %v122
    %v124 = vadd.f32 %v120, %v123
    %s125 = sld [smem:[#allocation6]]
    %v126 = vstv %s125
    %v127 = vadd.f32 %v124, %v126
    %s128 = sld [smem:[#allocation3 + $0x80]]
    %v129 = vstv %s128
    %v130 = vmul.f32 %v108, %v129
    %s131 = sld [smem:[#allocation3 + $0x81]]
    %v132 = vstv %s131
    %v133 = vmul.f32 %v102, %v132
    %v134 = vadd.f32 %v130, %v133
    %s135 = sld [smem:[#allocation3 + $0x82]]
    %v136 = vstv %s135
    %v137 = vmul.f32 %v113, %v136
    %v138 = vadd.f32 %v134, %v137
    %s139 = sld [smem:[#allocation6 + $0x1]]
    %v140 = vstv %s139
    %v141 = vadd.f32 %v138, %v140
    %s142 = sld [smem:[#allocation3 + $0x100]]
    %v143 = vstv %s142
    %v144 = vmul.f32 %v108, %v143
    %s145 = sld [smem:[#allocation3 + $0x101]]
    %v146 = vstv %s145
    %v147 = vmul.f32 %v102, %v146
    %v148 = vadd.f32 %v144, %v147
    %s149 = sld [smem:[#allocation3 + $0x102]]
    %v150 = vstv %s149
    %v151 = vmul.f32 %v113, %v150
    %v152 = vadd.f32 %v148, %v151
    %s153 = sld [smem:[#allocation6 + $0x2]]
    %v154 = vstv %s153
    %v155 = vadd.f32 %v152, %v154
    %s156 = sld [smem:[#allocation3 + $0x180]]
    %v157 = vstv %s156
    %v158 = vmul.f32 %v108, %v157
    %s159 = sld [smem:[#allocation3 + $0x181]]
    %v160 = vstv %s159
    %v161 = vmul.f32 %v102, %v160
    %v162 = vadd.f32 %v158, %v161
    %s163 = sld [smem:[#allocation3 + $0x182]]
    %v164 = vstv %s163
    %v165 = vmul.f32 %v113, %v164
    %v166 = vadd.f32 %v162, %v165
    %s167 = sld [smem:[#allocation6 + $0x3]]
    %v168 = vstv %s167
    %v169 = vadd.f32 %v166, %v168
    %171 = vrot.lane.b32.xlu0 %v141, 32
    %v172 = vpop.permute.xlu0 %171
    %175 = vrot.lane.b32.xlu0 %v155, 64
    %v176 = vpop.permute.xlu0 %175
    %179 = vrot.lane.b32.xlu0 %v169, 96
    %v180 = vpop.permute.xlu0 %179
    %vm182 = vcmask 261120
    %v183 = vsel %vm182, %v127, %v172
    %vm184 = vcmask 523264
    %v185 = vsel %vm184, %v183, %v176
    %vm186 = vcmask 785408
    %v187 = vsel %vm186, %v185, %v180
    %189 = vrot.lane.b32.xlu0 %v187, 127
    %v190 = vpop.permute.xlu0 %189
    %v192 = vmax.f32 %v187, %v190
    %v193 = vlaneseq
    %v194 = vshrl.u32 %v193, 7
    %v195 = vadd.s32 %v194, 8
    %v196 = vadd.s32 %v194, 16
    %v197 = vadd.s32 %v194, 24
    %v198 = vadd.s32 %v194, 32
    %v199 = vadd.s32 %v194, 40
    %v200 = vadd.s32 %v194, 48
    %v201 = vadd.s32 %v194, 56
    %v202 = vadd.s32 %v194, 64
    %v203 = vadd.s32 %v194, 72
    %v204 = vadd.s32 %v194, 80
    %v205 = vadd.s32 %v194, 88
    %v206 = vadd.s32 %v194, 96
    %v207 = vadd.s32 %v194, 104
    %v208 = vadd.s32 %v194, 112
    %v209 = vadd.s32 %v194, 120
    %v210 = vlaneseq
    %v211 = vand.u32 %v210, 127
    %v212 = vmul.u32 %v211, 2
    %vm213 = vcmp.eq.s32.totalorder %v194, %v212
    %vm214 = vcmp.eq.s32.totalorder %v195, %v212
    %vm215 = vcmp.eq.s32.totalorder %v196, %v212
    %vm216 = vcmp.eq.s32.totalorder %v197, %v212
    %vm217 = vcmp.eq.s32.totalorder %v198, %v212
    %vm218 = vcmp.eq.s32.totalorder %v199, %v212
    %vm219 = vcmp.eq.s32.totalorder %v200, %v212
    %vm220 = vcmp.eq.s32.totalorder %v201, %v212
    %vm221 = vcmp.eq.s32.totalorder %v202, %v212
    %vm222 = vcmp.eq.s32.totalorder %v203, %v212
    %vm223 = vcmp.eq.s32.totalorder %v204, %v212
    %vm224 = vcmp.eq.s32.totalorder %v205, %v212
    %vm225 = vcmp.eq.s32.totalorder %v206, %v212
    %vm226 = vcmp.eq.s32.totalorder %v207, %v212
    %vm227 = vcmp.eq.s32.totalorder %v208, %v212
    %vm228 = vcmp.eq.s32.totalorder %v209, %v212
    %v229 = vsel %vm213, 1, 0
    %v230 = vsel %vm214, 1, 0
    %v231 = vsel %vm215, 1, 0
    %v232 = vsel %vm216, 1, 0
    %v233 = vsel %vm217, 1, 0
    %v234 = vsel %vm218, 1, 0
    %v235 = vsel %vm219, 1, 0
    %v236 = vsel %vm220, 1, 0
    %v237 = vsel %vm221, 1, 0
    %v238 = vsel %vm222, 1, 0
    %v239 = vsel %vm223, 1, 0
    %v240 = vsel %vm224, 1, 0
    %v241 = vsel %vm225, 1, 0
    %v242 = vsel %vm226, 1, 0
    %v243 = vsel %vm227, 1, 0
    %v244 = vsel %vm228, 1, 0
    %v245 = vcvt.s32.f32 %v229
    %v246 = vcvt.s32.f32 %v230
    %v247 = vcvt.s32.f32 %v231
    %v248 = vcvt.s32.f32 %v232
    %v249 = vcvt.s32.f32 %v233
    %v250 = vcvt.s32.f32 %v234
    %v251 = vcvt.s32.f32 %v235
    %v252 = vcvt.s32.f32 %v236
    %v253 = vcvt.s32.f32 %v237
    %v254 = vcvt.s32.f32 %v238
    %v255 = vcvt.s32.f32 %v239
    %v256 = vcvt.s32.f32 %v240
    %v257 = vcvt.s32.f32 %v241
    %v258 = vcvt.s32.f32 %v242
    %v259 = vcvt.s32.f32 %v243
    %v260 = vcvt.s32.f32 %v244
    %261 = vmatpush.msra.mxu0 %v260
    %262 = vmatpush.msra.mxu0 %v259
    %263 = vmatpush.msra.mxu0 %v258
    %264 = vmatpush.msra.mxu0 %v257
    %265 = vmatpush.msra.mxu0 %v256
    %266 = vmatpush.msra.mxu0 %v255
    %267 = vmatpush.msra.mxu0 %v254
    %268 = vmatpush.msra.mxu0 %v253
    %269 = vmatpush.msra.mxu0 %v252
    %270 = vmatpush.msra.mxu0 %v251
    %271 = vmatpush.msra.mxu0 %v250
    %272 = vmatpush.msra.mxu0 %v249
    %273 = vmatpush.msra.mxu0 %v248
    %274 = vmatpush.msra.mxu0 %v247
    %275 = vmatpush.msra.mxu0 %v246
    %276 = vmatpush.msra.mxu0 %v245
    %277 = vmatmul.f32.gmra.mxu0 %v192
    %v278 = vpop.f32.mrf.mxu0
    %v279 = vadd.f32 0.0, %v278
    %280 = vdwg.mxu0
    %282 = vrot.lane.b32.xlu0 %v279, 112
    %v283 = vpop.permute.xlu0 %282
    %285 = vrot.lane.b32.xlu0 %v279, 96
    %v286 = vpop.permute.xlu0 %285
    %288 = vrot.lane.b32.xlu0 %v279, 80
    %v289 = vpop.permute.xlu0 %288
    %v291 = vpack.c.bf16 %v283, %v279
    %v292 = vpack.c.bf16 %v289, %v286
    %v293 = vld [vmem:[#allocation8] sm:$0xff]
    %v294 = vld [vmem:[#allocation8 + $0x8] sm:$0xff]
    %v295 = vld [vmem:[#allocation8 + $0x10] sm:$0xff]
    %v296 = vld [vmem:[#allocation8 + $0x18] sm:$0xff]
    %v297 = vld [vmem:[#allocation8 + $0x20] sm:$0xff]
    %v298 = vld [vmem:[#allocation8 + $0x28] sm:$0xff]
    %v299 = vld [vmem:[#allocation8 + $0x30] sm:$0xff]
    %v300 = vld [vmem:[#allocation8 + $0x38] sm:$0xff]
    %v301 = vld [vmem:[%s5] sm:$0xff]
    %v303 = vperm.slane %v301, 0
    %v304 = vperm.slane %v301, 1
    %v305 = vperm.slane %v301, 2
    %v306 = vperm.slane %v301, 3
    %v307 = vperm.slane %v301, 4
    %v308 = vperm.slane %v301, 5
    %v309 = vperm.slane %v301, 6
    %v310 = vperm.slane %v301, 7
    %v327 = vunpack.c.l.b16 %v293
    %v328 = vunpack.c.h.b16 %v293
    %v329 = vunpack.c.l.b16 %v294
    %v330 = vunpack.c.h.b16 %v294
    %v331 = vunpack.c.l.b16 %v295
    %v332 = vunpack.c.h.b16 %v295
    %v333 = vunpack.c.l.b16 %v296
    %v334 = vunpack.c.h.b16 %v296
    %v335 = vunpack.c.l.b16 %v297
    %v336 = vunpack.c.h.b16 %v297
    %v337 = vunpack.c.l.b16 %v298
    %v338 = vunpack.c.h.b16 %v298
    %v339 = vunpack.c.l.b16 %v299
    %v340 = vunpack.c.h.b16 %v299
    %v341 = vunpack.c.l.b16 %v300
    %v342 = vunpack.c.h.b16 %v300
    %v343 = vpack.c.b16 %v335, %v327
    %v344 = vpack.c.b16 %v336, %v328
    %v345 = vpack.c.b16 %v337, %v329
    %v346 = vpack.c.b16 %v338, %v330
    %v347 = vpack.c.b16 %v339, %v331
    %v348 = vpack.c.b16 %v340, %v332
    %v349 = vpack.c.b16 %v341, %v333
    %v350 = vpack.c.b16 %v342, %v334
    %vm359 = vcmask 130048
    %v361 = vsel %vm359, %v291, 0
    %v364 = vsel %vm359, %v292, 0
    %366 = vmatpush.bf16.msra.mxu0 0
    %367 = vmatpush.bf16.msra.mxu0 0
    %368 = vmatpush.bf16.msra.mxu0 0
    %369 = vmatpush.bf16.msra.mxu0 0
    %370 = vmatpush.bf16.msra.mxu0 0
    %371 = vmatpush.bf16.msra.mxu0 0
    %372 = vmatpush.bf16.msra.mxu0 0
    %373 = vmatpush.bf16.msra.mxu0 %v343
    %374 = vmatmul.bf16.gmra.mxu0 %v361
    %v375 = vpop.f32.mrf.mxu0
    %v376 = vadd.f32 %v303, %v375
    %v377 = vpop.f32.mrf.mxu0
    %v378 = vadd.f32 %v303, %v377
    %379 = vmatmul.bf16.gmra.mxu0 %v364
    %v380 = vpop.f32.mrf.mxu0
    %v381 = vadd.f32 %v303, %v380
    %v382 = vpop.f32.mrf.mxu0
    %v383 = vadd.f32 %v303, %v382
    %384 = vdwg.mxu0
    %385 = vmatpush.bf16.msra.mxu0 0
    %386 = vmatpush.bf16.msra.mxu0 0
    %387 = vmatpush.bf16.msra.mxu0 0
    %388 = vmatpush.bf16.msra.mxu0 0
    %389 = vmatpush.bf16.msra.mxu0 0
    %390 = vmatpush.bf16.msra.mxu0 0
    %391 = vmatpush.bf16.msra.mxu0 0
    %392 = vmatpush.bf16.msra.mxu0 %v344
    %393 = vmatmul.bf16.gmra.mxu0 %v361
    %v394 = vpop.f32.mrf.mxu0
    %v395 = vadd.f32 %v304, %v394
    %v396 = vpop.f32.mrf.mxu0
    %v397 = vadd.f32 %v304, %v396
    %398 = vmatmul.bf16.gmra.mxu0 %v364
    %v399 = vpop.f32.mrf.mxu0
    %v400 = vadd.f32 %v304, %v399
    %v401 = vpop.f32.mrf.mxu0
    %v402 = vadd.f32 %v304, %v401
    %403 = vdwg.mxu0
    %404 = vmatpush.bf16.msra.mxu0 0
    %405 = vmatpush.bf16.msra.mxu0 0
    %406 = vmatpush.bf16.msra.mxu0 0
    %407 = vmatpush.bf16.msra.mxu0 0
    %408 = vmatpush.bf16.msra.mxu0 0
    %409 = vmatpush.bf16.msra.mxu0 0
    %410 = vmatpush.bf16.msra.mxu0 0
    %411 = vmatpush.bf16.msra.mxu0 %v345
    %412 = vmatmul.bf16.gmra.mxu0 %v361
    %v413 = vpop.f32.mrf.mxu0
    %v414 = vadd.f32 %v305, %v413
    %v415 = vpop.f32.mrf.mxu0
    %v416 = vadd.f32 %v305, %v415
    %417 = vmatmul.bf16.gmra.mxu0 %v364
    %v418 = vpop.f32.mrf.mxu0
    %v419 = vadd.f32 %v305, %v418
    %v420 = vpop.f32.mrf.mxu0
    %v421 = vadd.f32 %v305, %v420
    %422 = vdwg.mxu0
    %423 = vmatpush.bf16.msra.mxu0 0
    %424 = vmatpush.bf16.msra.mxu0 0
    %425 = vmatpush.bf16.msra.mxu0 0
    %426 = vmatpush.bf16.msra.mxu0 0
    %427 = vmatpush.bf16.msra.mxu0 0
    %428 = vmatpush.bf16.msra.mxu0 0
    %429 = vmatpush.bf16.msra.mxu0 0
    %430 = vmatpush.bf16.msra.mxu0 %v346
    %431 = vmatmul.bf16.gmra.mxu0 %v361
    %v432 = vpop.f32.mrf.mxu0
    %v433 = vadd.f32 %v306, %v432
    %v434 = vpop.f32.mrf.mxu0
    %v435 = vadd.f32 %v306, %v434
    %436 = vmatmul.bf16.gmra.mxu0 %v364
    %v437 = vpop.f32.mrf.mxu0
    %v438 = vadd.f32 %v306, %v437
    %v439 = vpop.f32.mrf.mxu0
    %v440 = vadd.f32 %v306, %v439
    %441 = vdwg.mxu0
    %442 = vmatpush.bf16.msra.mxu0 0
    %443 = vmatpush.bf16.msra.mxu0 0
    %444 = vmatpush.bf16.msra.mxu0 0
    %445 = vmatpush.bf16.msra.mxu0 0
    %446 = vmatpush.bf16.msra.mxu0 0
    %447 = vmatpush.bf16.msra.mxu0 0
    %448 = vmatpush.bf16.msra.mxu0 0
    %449 = vmatpush.bf16.msra.mxu0 %v347
    %450 = vmatmul.bf16.gmra.mxu0 %v361
    %v451 = vpop.f32.mrf.mxu0
    %v452 = vadd.f32 %v307, %v451
    %v453 = vpop.f32.mrf.mxu0
    %v454 = vadd.f32 %v307, %v453
    %455 = vmatmul.bf16.gmra.mxu0 %v364
    %v456 = vpop.f32.mrf.mxu0
    %v457 = vadd.f32 %v307, %v456
    %v458 = vpop.f32.mrf.mxu0
    %v459 = vadd.f32 %v307, %v458
    %460 = vdwg.mxu0
    %461 = vmatpush.bf16.msra.mxu0 0
    %462 = vmatpush.bf16.msra.mxu0 0
    %463 = vmatpush.bf16.msra.mxu0 0
    %464 = vmatpush.bf16.msra.mxu0 0
    %465 = vmatpush.bf16.msra.mxu0 0
    %466 = vmatpush.bf16.msra.mxu0 0
    %467 = vmatpush.bf16.msra.mxu0 0
    %468 = vmatpush.bf16.msra.mxu0 %v348
    %469 = vmatmul.bf16.gmra.mxu0 %v361
    %v470 = vpop.f32.mrf.mxu0
    %v471 = vadd.f32 %v308, %v470
    %v472 = vpop.f32.mrf.mxu0
    %v473 = vadd.f32 %v308, %v472
    %474 = vmatmul.bf16.gmra.mxu0 %v364
    %v475 = vpop.f32.mrf.mxu0
    %v476 = vadd.f32 %v308, %v475
    %v477 = vpop.f32.mrf.mxu0
    %v478 = vadd.f32 %v308, %v477
    %479 = vdwg.mxu0
    %480 = vmatpush.bf16.msra.mxu0 0
    %481 = vmatpush.bf16.msra.mxu0 0
    %482 = vmatpush.bf16.msra.mxu0 0
    %483 = vmatpush.bf16.msra.mxu0 0
    %484 = vmatpush.bf16.msra.mxu0 0
    %485 = vmatpush.bf16.msra.mxu0 0
    %486 = vmatpush.bf16.msra.mxu0 0
    %487 = vmatpush.bf16.msra.mxu0 %v349
    %488 = vmatmul.bf16.gmra.mxu0 %v361
    %v489 = vpop.f32.mrf.mxu0
    %v490 = vadd.f32 %v309, %v489
    %v491 = vpop.f32.mrf.mxu0
    %v492 = vadd.f32 %v309, %v491
    %493 = vmatmul.bf16.gmra.mxu0 %v364
    %v494 = vpop.f32.mrf.mxu0
    %v495 = vadd.f32 %v309, %v494
    %v496 = vpop.f32.mrf.mxu0
    %v497 = vadd.f32 %v309, %v496
    %498 = vdwg.mxu0
    %499 = vmatpush.bf16.msra.mxu0 0
    %500 = vmatpush.bf16.msra.mxu0 0
    %501 = vmatpush.bf16.msra.mxu0 0
    %502 = vmatpush.bf16.msra.mxu0 0
    %503 = vmatpush.bf16.msra.mxu0 0
    %504 = vmatpush.bf16.msra.mxu0 0
    %505 = vmatpush.bf16.msra.mxu0 0
    %506 = vmatpush.bf16.msra.mxu0 %v350
    %507 = vmatmul.bf16.gmra.mxu0 %v361
    %v508 = vpop.f32.mrf.mxu0
    %v509 = vadd.f32 %v310, %v508
    %v510 = vpop.f32.mrf.mxu0
    %v511 = vadd.f32 %v310, %v510
    %512 = vmatmul.bf16.gmra.mxu0 %v364
    %v513 = vpop.f32.mrf.mxu0
    %v514 = vadd.f32 %v310, %v513
    %v515 = vpop.f32.mrf.mxu0
    %v516 = vadd.f32 %v310, %v515
    %517 = vdwg.mxu0
    %518 = vst [vmem:[#allocation2] sm:$0xff] %v376
    %519 = vst [vmem:[#allocation2 + $0x8] sm:$0xff] %v395
    %520 = vst [vmem:[#allocation2 + $0x10] sm:$0xff] %v414
    %521 = vst [vmem:[#allocation2 + $0x18] sm:$0xff] %v433
    %522 = vst [vmem:[#allocation2 + $0x20] sm:$0xff] %v452
    %523 = vst [vmem:[#allocation2 + $0x28] sm:$0xff] %v471
    %524 = vst [vmem:[#allocation2 + $0x30] sm:$0xff] %v490
    %525 = vst [vmem:[#allocation2 + $0x38] sm:$0xff] %v509
    %s526 = scalar_lea.vmem [#allocation2], 64
    %527 = vst [vmem:[%s526] sm:$0xff] %v378
    %528 = vst [vmem:[%s526 + $0x8] sm:$0xff] %v397
    %529 = vst [vmem:[%s526 + $0x10] sm:$0xff] %v416
    %530 = vst [vmem:[%s526 + $0x18] sm:$0xff] %v435
    %531 = vst [vmem:[%s526 + $0x20] sm:$0xff] %v454
    %532 = vst [vmem:[%s526 + $0x28] sm:$0xff] %v473
    %533 = vst [vmem:[%s526 + $0x30] sm:$0xff] %v492
    %534 = vst [vmem:[%s526 + $0x38] sm:$0xff] %v511
    %s535 = scalar_lea.vmem [#allocation2], 128
    %536 = vst [vmem:[%s535] sm:$0xff] %v381
    %537 = vst [vmem:[%s535 + $0x8] sm:$0xff] %v400
    %538 = vst [vmem:[%s535 + $0x10] sm:$0xff] %v419
    %539 = vst [vmem:[%s535 + $0x18] sm:$0xff] %v438
    %540 = vst [vmem:[%s535 + $0x20] sm:$0xff] %v457
    %541 = vst [vmem:[%s535 + $0x28] sm:$0xff] %v476
    %542 = vst [vmem:[%s535 + $0x30] sm:$0xff] %v495
    %543 = vst [vmem:[%s535 + $0x38] sm:$0xff] %v514
    %s544 = scalar_lea.vmem [#allocation2], 192
    %545 = vst [vmem:[%s544] sm:$0xff] %v383
    %546 = vst [vmem:[%s544 + $0x8] sm:$0xff] %v402
    %547 = vst [vmem:[%s544 + $0x10] sm:$0xff] %v421
    %548 = vst [vmem:[%s544 + $0x18] sm:$0xff] %v440
    %549 = vst [vmem:[%s544 + $0x20] sm:$0xff] %v459
    %550 = vst [vmem:[%s544 + $0x28] sm:$0xff] %v478
    %551 = vst [vmem:[%s544 + $0x30] sm:$0xff] %v497
    %552 = vst [vmem:[%s544 + $0x38] sm:$0xff] %v516
    loop: start=0, step=1, limit=4
    $region54: #{model_forward.1} parent=1 // loop_pre_header
      _
    $region55: #{model_forward.1} parent=1 // loop_header
      %s554 = sphi 0, %s558
      %p555 = scmp.ge.s32.totalorder %s554, 4
      %v559 = vphi 0.0, %v1594
      %v560 = vphi 0.0, %v1595
      %v561 = vphi 0.0, %v1590
      %v562 = vphi 0.0, %v1591
    $region56: #{model_forward.1} parent=1 // loop_header_branch
      %557 = sbr.rel (%p555) target = $region60
    $region57: #{model_forward.1} parent=1 // loop_body
      %s563 = smul.u32 %s554, 8
      %s564 = smul.addr %s563, 8
      %s565 = scalar_lea.vmem [#allocation2], %s564
      %v566 = vld [vmem:[%s565] sm:$0xff]
      %v567 = vld [vmem:[%s565 + $0x8] sm:$0xff]
      %v568 = vld [vmem:[%s565 + $0x10] sm:$0xff]
      %v569 = vld [vmem:[%s565 + $0x18] sm:$0xff]
      %v570 = vld [vmem:[%s565 + $0x20] sm:$0xff]
      %v571 = vld [vmem:[%s565 + $0x28] sm:$0xff]
      %v572 = vld [vmem:[%s565 + $0x30] sm:$0xff]
      %v573 = vld [vmem:[%s565 + $0x38] sm:$0xff]
      %v574 = vpack.c.bf16 %v559, %v559
      %v575 = vpack.c.bf16 %v560, %v560
      %v576 = vld [vmem:[#allocation9] sm:$0xff]
      %v577 = vld [vmem:[#allocation9 + $0x8] sm:$0xff]
      %v578 = vld [vmem:[#allocation9 + $0x10] sm:$0xff]
      %v579 = vld [vmem:[#allocation9 + $0x18] sm:$0xff]
      %v580 = vld [vmem:[#allocation9 + $0x20] sm:$0xff]
      %v581 = vld [vmem:[#allocation9 + $0x28] sm:$0xff]
      %v582 = vld [vmem:[#allocation9 + $0x30] sm:$0xff]
      %v583 = vld [vmem:[#allocation9 + $0x38] sm:$0xff]
      %v584 = vld [vmem:[#allocation9 + $0x40] sm:$0xff]
      %v585 = vld [vmem:[#allocation9 + $0x48] sm:$0xff]
      %v586 = vld [vmem:[#allocation9 + $0x50] sm:$0xff]
      %v587 = vld [vmem:[#allocation9 + $0x58] sm:$0xff]
      %v588 = vld [vmem:[#allocation9 + $0x60] sm:$0xff]
      %v589 = vld [vmem:[#allocation9 + $0x68] sm:$0xff]
      %v590 = vld [vmem:[#allocation9 + $0x70] sm:$0xff]
      %v591 = vld [vmem:[#allocation9 + $0x78] sm:$0xff]
      %v592 = vld [vmem:[#allocation9 + $0x80] sm:$0xff]
      %v593 = vld [vmem:[#allocation9 + $0x88] sm:$0xff]
      %v594 = vld [vmem:[#allocation9 + $0x90] sm:$0xff]
      %v595 = vld [vmem:[#allocation9 + $0x98] sm:$0xff]
      %v596 = vld [vmem:[#allocation9 + $0xa0] sm:$0xff]
      %v597 = vld [vmem:[#allocation9 + $0xa8] sm:$0xff]
      %v598 = vld [vmem:[#allocation9 + $0xb0] sm:$0xff]
      %v599 = vld [vmem:[#allocation9 + $0xb8] sm:$0xff]
      %v600 = vld [vmem:[#allocation9 + $0xc0] sm:$0xff]
      %v601 = vld [vmem:[#allocation9 + $0xc8] sm:$0xff]
      %v602 = vld [vmem:[#allocation9 + $0xd0] sm:$0xff]
      %v603 = vld [vmem:[#allocation9 + $0xd8] sm:$0xff]
      %v604 = vld [vmem:[#allocation9 + $0xe0] sm:$0xff]
      %v605 = vld [vmem:[#allocation9 + $0xe8] sm:$0xff]
      %v606 = vld [vmem:[#allocation9 + $0xf0] sm:$0xff]
      %v607 = vld [vmem:[#allocation9 + $0xf8] sm:$0xff]
      %v608 = vld [vmem:[#allocation9 + $0x100] sm:$0xff]
      %v609 = vld [vmem:[#allocation9 + $0x108] sm:$0xff]
      %v610 = vld [vmem:[#allocation9 + $0x110] sm:$0xff]
      %v611 = vld [vmem:[#allocation9 + $0x118] sm:$0xff]
      %v612 = vld [vmem:[#allocation9 + $0x120] sm:$0xff]
      %v613 = vld [vmem:[#allocation9 + $0x128] sm:$0xff]
      %v614 = vld [vmem:[#allocation9 + $0x130] sm:$0xff]
      %v615 = vld [vmem:[#allocation9 + $0x138] sm:$0xff]
      %v616 = vld [vmem:[#allocation9 + $0x140] sm:$0xff]
      %v617 = vld [vmem:[#allocation9 + $0x148] sm:$0xff]
      %v618 = vld [vmem:[#allocation9 + $0x150] sm:$0xff]
      %v619 = vld [vmem:[#allocation9 + $0x158] sm:$0xff]
      %v620 = vld [vmem:[#allocation9 + $0x160] sm:$0xff]
      %v621 = vld [vmem:[#allocation9 + $0x168] sm:$0xff]
      %v622 = vld [vmem:[#allocation9 + $0x170] sm:$0xff]
      %v623 = vld [vmem:[#allocation9 + $0x178] sm:$0xff]
      %v624 = vld [vmem:[#allocation9 + $0x180] sm:$0xff]
      %v625 = vld [vmem:[#allocation9 + $0x188] sm:$0xff]
      %v626 = vld [vmem:[#allocation9 + $0x190] sm:$0xff]
      %v627 = vld [vmem:[#allocation9 + $0x198] sm:$0xff]
      %v628 = vld [vmem:[#allocation9 + $0x1a0] sm:$0xff]
      %v629 = vld [vmem:[#allocation9 + $0x1a8] sm:$0xff]
      %v630 = vld [vmem:[#allocation9 + $0x1b0] sm:$0xff]
      %v631 = vld [vmem:[#allocation9 + $0x1b8] sm:$0xff]
      %v632 = vld [vmem:[#allocation9 + $0x1c0] sm:$0xff]
      %v633 = vld [vmem:[#allocation9 + $0x1c8] sm:$0xff]
      %v634 = vld [vmem:[#allocation9 + $0x1d0] sm:$0xff]
      %v635 = vld [vmem:[#allocation9 + $0x1d8] sm:$0xff]
      %v636 = vld [vmem:[#allocation9 + $0x1e0] sm:$0xff]
      %v637 = vld [vmem:[#allocation9 + $0x1e8] sm:$0xff]
      %v638 = vld [vmem:[#allocation9 + $0x1f0] sm:$0xff]
      %v639 = vld [vmem:[#allocation9 + $0x1f8] sm:$0xff]
      %v640 = vld [vmem:[#allocation9 + $0x200] sm:$0xff]
      %v641 = vld [vmem:[#allocation9 + $0x208] sm:$0xff]
      %v642 = vld [vmem:[#allocation9 + $0x210] sm:$0xff]
      %v643 = vld [vmem:[#allocation9 + $0x218] sm:$0xff]
      %v644 = vld [vmem:[#allocation9 + $0x220] sm:$0xff]
      %v645 = vld [vmem:[#allocation9 + $0x228] sm:$0xff]
      %v646 = vld [vmem:[#allocation9 + $0x230] sm:$0xff]
      %v647 = vld [vmem:[#allocation9 + $0x238] sm:$0xff]
      %v648 = vld [vmem:[#allocation9 + $0x240] sm:$0xff]
      %v649 = vld [vmem:[#allocation9 + $0x248] sm:$0xff]
      %v650 = vld [vmem:[#allocation9 + $0x250] sm:$0xff]
      %v651 = vld [vmem:[#allocation9 + $0x258] sm:$0xff]
      %v652 = vld [vmem:[#allocation9 + $0x260] sm:$0xff]
      %v653 = vld [vmem:[#allocation9 + $0x268] sm:$0xff]
      %v654 = vld [vmem:[#allocation9 + $0x270] sm:$0xff]
      %v655 = vld [vmem:[#allocation9 + $0x278] sm:$0xff]
      %v656 = vld [vmem:[#allocation9 + $0x280] sm:$0xff]
      %v657 = vld [vmem:[#allocation9 + $0x288] sm:$0xff]
      %v658 = vld [vmem:[#allocation9 + $0x290] sm:$0xff]
      %v659 = vld [vmem:[#allocation9 + $0x298] sm:$0xff]
      %v660 = vld [vmem:[#allocation9 + $0x2a0] sm:$0xff]
      %v661 = vld [vmem:[#allocation9 + $0x2a8] sm:$0xff]
      %v662 = vld [vmem:[#allocation9 + $0x2b0] sm:$0xff]
      %v663 = vld [vmem:[#allocation9 + $0x2b8] sm:$0xff]
      %v664 = vld [vmem:[#allocation9 + $0x2c0] sm:$0xff]
      %v665 = vld [vmem:[#allocation9 + $0x2c8] sm:$0xff]
      %v666 = vld [vmem:[#allocation9 + $0x2d0] sm:$0xff]
      %v667 = vld [vmem:[#allocation9 + $0x2d8] sm:$0xff]
      %v668 = vld [vmem:[#allocation9 + $0x2e0] sm:$0xff]
      %v669 = vld [vmem:[#allocation9 + $0x2e8] sm:$0xff]
      %v670 = vld [vmem:[#allocation9 + $0x2f0] sm:$0xff]
      %v671 = vld [vmem:[#allocation9 + $0x2f8] sm:$0xff]
      %v672 = vld [vmem:[#allocation9 + $0x300] sm:$0xff]
      %v673 = vld [vmem:[#allocation9 + $0x308] sm:$0xff]
      %v674 = vld [vmem:[#allocation9 + $0x310] sm:$0xff]
      %v675 = vld [vmem:[#allocation9 + $0x318] sm:$0xff]
      %v676 = vld [vmem:[#allocation9 + $0x320] sm:$0xff]
      %v677 = vld [vmem:[#allocation9 + $0x328] sm:$0xff]
      %v678 = vld [vmem:[#allocation9 + $0x330] sm:$0xff]
      %v679 = vld [vmem:[#allocation9 + $0x338] sm:$0xff]
      %v680 = vld [vmem:[#allocation9 + $0x340] sm:$0xff]
      %v681 = vld [vmem:[#allocation9 + $0x348] sm:$0xff]
      %v682 = vld [vmem:[#allocation9 + $0x350] sm:$0xff]
      %v683 = vld [vmem:[#allocation9 + $0x358] sm:$0xff]
      %v684 = vld [vmem:[#allocation9 + $0x360] sm:$0xff]
      %v685 = vld [vmem:[#allocation9 + $0x368] sm:$0xff]
      %v686 = vld [vmem:[#allocation9 + $0x370] sm:$0xff]
      %v687 = vld [vmem:[#allocation9 + $0x378] sm:$0xff]
      %v688 = vld [vmem:[#allocation9 + $0x380] sm:$0xff]
      %v689 = vld [vmem:[#allocation9 + $0x388] sm:$0xff]
      %v690 = vld [vmem:[#allocation9 + $0x390] sm:$0xff]
      %v691 = vld [vmem:[#allocation9 + $0x398] sm:$0xff]
      %v692 = vld [vmem:[#allocation9 + $0x3a0] sm:$0xff]
      %v693 = vld [vmem:[#allocation9 + $0x3a8] sm:$0xff]
      %v694 = vld [vmem:[#allocation9 + $0x3b0] sm:$0xff]
      %v695 = vld [vmem:[#allocation9 + $0x3b8] sm:$0xff]
      %v696 = vld [vmem:[#allocation9 + $0x3c0] sm:$0xff]
      %v697 = vld [vmem:[#allocation9 + $0x3c8] sm:$0xff]
      %v698 = vld [vmem:[#allocation9 + $0x3d0] sm:$0xff]
      %v699 = vld [vmem:[#allocation9 + $0x3d8] sm:$0xff]
      %v700 = vld [vmem:[#allocation9 + $0x3e0] sm:$0xff]
      %v701 = vld [vmem:[#allocation9 + $0x3e8] sm:$0xff]
      %v702 = vld [vmem:[#allocation9 + $0x3f0] sm:$0xff]
      %v703 = vld [vmem:[#allocation9 + $0x3f8] sm:$0xff]
      %v832 = vunpack.c.l.b16 %v576
      %v833 = vunpack.c.h.b16 %v576
      %v834 = vunpack.c.l.b16 %v577
      %v835 = vunpack.c.h.b16 %v577
      %v836 = vunpack.c.l.b16 %v578
      %v837 = vunpack.c.h.b16 %v578
      %v838 = vunpack.c.l.b16 %v579
      %v839 = vunpack.c.h.b16 %v579
      %v840 = vunpack.c.l.b16 %v580
      %v841 = vunpack.c.h.b16 %v580
      %v842 = vunpack.c.l.b16 %v581
      %v843 = vunpack.c.h.b16 %v581
      %v844 = vunpack.c.l.b16 %v582
      %v845 = vunpack.c.h.b16 %v582
      %v846 = vunpack.c.l.b16 %v583
      %v847 = vunpack.c.h.b16 %v583
      %v848 = vunpack.c.l.b16 %v584
      %v849 = vunpack.c.h.b16 %v584
      %v850 = vunpack.c.l.b16 %v585
      %v851 = vunpack.c.h.b16 %v585
      %v852 = vunpack.c.l.b16 %v586
      %v853 = vunpack.c.h.b16 %v586
      %v854 = vunpack.c.l.b16 %v587
      %v855 = vunpack.c.h.b16 %v587
      %v856 = vunpack.c.l.b16 %v588
      %v857 = vunpack.c.h.b16 %v588
      %v858 = vunpack.c.l.b16 %v589
      %v859 = vunpack.c.h.b16 %v589
      %v860 = vunpack.c.l.b16 %v590
      %v861 = vunpack.c.h.b16 %v590
      %v862 = vunpack.c.l.b16 %v591
      %v863 = vunpack.c.h.b16 %v591
      %v864 = vunpack.c.l.b16 %v592
      %v865 = vunpack.c.h.b16 %v592
      %v866 = vunpack.c.l.b16 %v593
      %v867 = vunpack.c.h.b16 %v593
      %v868 = vunpack.c.l.b16 %v594
      %v869 = vunpack.c.h.b16 %v594
      %v870 = vunpack.c.l.b16 %v595
      %v871 = vunpack.c.h.b16 %v595
      %v872 = vunpack.c.l.b16 %v596
      %v873 = vunpack.c.h.b16 %v596
      %v874 = vunpack.c.l.b16 %v597
      %v875 = vunpack.c.h.b16 %v597
      %v876 = vunpack.c.l.b16 %v598
      %v877 = vunpack.c.h.b16 %v598
      %v878 = vunpack.c.l.b16 %v599
      %v879 = vunpack.c.h.b16 %v599
      %v880 = vunpack.c.l.b16 %v600
      %v881 = vunpack.c.h.b16 %v600
      %v882 = vunpack.c.l.b16 %v601
      %v883 = vunpack.c.h.b16 %v601
      %v884 = vunpack.c.l.b16 %v602
      %v885 = vunpack.c.h.b16 %v602
      %v886 = vunpack.c.l.b16 %v603
      %v887 = vunpack.c.h.b16 %v603
      %v888 = vunpack.c.l.b16 %v604
      %v889 = vunpack.c.h.b16 %v604
      %v890 = vunpack.c.l.b16 %v605
      %v891 = vunpack.c.h.b16 %v605
      %v892 = vunpack.c.l.b16 %v606
      %v893 = vunpack.c.h.b16 %v606
      %v894 = vunpack.c.l.b16 %v607
      %v895 = vunpack.c.h.b16 %v607
      %v896 = vunpack.c.l.b16 %v608
      %v897 = vunpack.c.h.b16 %v608
      %v898 = vunpack.c.l.b16 %v609
      %v899 = vunpack.c.h.b16 %v609
      %v900 = vunpack.c.l.b16 %v610
      %v901 = vunpack.c.h.b16 %v610
      %v902 = vunpack.c.l.b16 %v611
      %v903 = vunpack.c.h.b16 %v611
      %v904 = vunpack.c.l.b16 %v612
      %v905 = vunpack.c.h.b16 %v612
      %v906 = vunpack.c.l.b16 %v613
      %v907 = vunpack.c.h.b16 %v613
      %v908 = vunpack.c.l.b16 %v614
      %v909 = vunpack.c.h.b16 %v614
      %v910 = vunpack.c.l.b16 %v615
      %v911 = vunpack.c.h.b16 %v615
      %v912 = vunpack.c.l.b16 %v616
      %v913 = vunpack.c.h.b16 %v616
      %v914 = vunpack.c.l.b16 %v617
      %v915 = vunpack.c.h.b16 %v617
      %v916 = vunpack.c.l.b16 %v618
      %v917 = vunpack.c.h.b16 %v618
      %v918 = vunpack.c.l.b16 %v619
      %v919 = vunpack.c.h.b16 %v619
      %v920 = vunpack.c.l.b16 %v620
      %v921 = vunpack.c.h.b16 %v620
      %v922 = vunpack.c.l.b16 %v621
      %v923 = vunpack.c.h.b16 %v621
      %v924 = vunpack.c.l.b16 %v622
      %v925 = vunpack.c.h.b16 %v622
      %v926 = vunpack.c.l.b16 %v623
      %v927 = vunpack.c.h.b16 %v623
      %v928 = vunpack.c.l.b16 %v624
      %v929 = vunpack.c.h.b16 %v624
      %v930 = vunpack.c.l.b16 %v625
      %v931 = vunpack.c.h.b16 %v625
      %v932 = vunpack.c.l.b16 %v626
      %v933 = vunpack.c.h.b16 %v626
      %v934 = vunpack.c.l.b16 %v627
      %v935 = vunpack.c.h.b16 %v627
      %v936 = vunpack.c.l.b16 %v628
      %v937 = vunpack.c.h.b16 %v628
      %v938 = vunpack.c.l.b16 %v629
      %v939 = vunpack.c.h.b16 %v629
      %v940 = vunpack.c.l.b16 %v630
      %v941 = vunpack.c.h.b16 %v630
      %v942 = vunpack.c.l.b16 %v631
      %v943 = vunpack.c.h.b16 %v631
      %v944 = vunpack.c.l.b16 %v632
      %v945 = vunpack.c.h.b16 %v632
      %v946 = vunpack.c.l.b16 %v633
      %v947 = vunpack.c.h.b16 %v633
      %v948 = vunpack.c.l.b16 %v634
      %v949 = vunpack.c.h.b16 %v634
      %v950 = vunpack.c.l.b16 %v635
      %v951 = vunpack.c.h.b16 %v635
      %v952 = vunpack.c.l.b16 %v636
      %v953 = vunpack.c.h.b16 %v636
      %v954 = vunpack.c.l.b16 %v637
      %v955 = vunpack.c.h.b16 %v637
      %v956 = vunpack.c.l.b16 %v638
      %v957 = vunpack.c.h.b16 %v638
      %v958 = vunpack.c.l.b16 %v639
      %v959 = vunpack.c.h.b16 %v639
      %v960 = vunpack.c.l.b16 %v640
      %v961 = vunpack.c.h.b16 %v640
      %v962 = vunpack.c.l.b16 %v641
      %v963 = vunpack.c.h.b16 %v641
      %v964 = vunpack.c.l.b16 %v642
      %v965 = vunpack.c.h.b16 %v642
      %v966 = vunpack.c.l.b16 %v643
      %v967 = vunpack.c.h.b16 %v643
      %v968 = vunpack.c.l.b16 %v644
      %v969 = vunpack.c.h.b16 %v644
      %v970 = vunpack.c.l.b16 %v645
      %v971 = vunpack.c.h.b16 %v645
      %v972 = vunpack.c.l.b16 %v646
      %v973 = vunpack.c.h.b16 %v646
      %v974 = vunpack.c.l.b16 %v647
      %v975 = vunpack.c.h.b16 %v647
      %v976 = vunpack.c.l.b16 %v648
      %v977 = vunpack.c.h.b16 %v648
      %v978 = vunpack.c.l.b16 %v649
      %v979 = vunpack.c.h.b16 %v649
      %v980 = vunpack.c.l.b16 %v650
      %v981 = vunpack.c.h.b16 %v650
      %v982 = vunpack.c.l.b16 %v651
      %v983 = vunpack.c.h.b16 %v651
      %v984 = vunpack.c.l.b16 %v652
      %v985 = vunpack.c.h.b16 %v652
      %v986 = vunpack.c.l.b16 %v653
      %v987 = vunpack.c.h.b16 %v653
      %v988 = vunpack.c.l.b16 %v654
      %v989 = vunpack.c.h.b16 %v654
      %v990 = vunpack.c.l.b16 %v655
      %v991 = vunpack.c.h.b16 %v655
      %v992 = vunpack.c.l.b16 %v656
      %v993 = vunpack.c.h.b16 %v656
      %v994 = vunpack.c.l.b16 %v657
      %v995 = vunpack.c.h.b16 %v657
      %v996 = vunpack.c.l.b16 %v658
      %v997 = vunpack.c.h.b16 %v658
      %v998 = vunpack.c.l.b16 %v659
      %v999 = vunpack.c.h.b16 %v659
      %v1000 = vunpack.c.l.b16 %v660
      %v1001 = vunpack.c.h.b16 %v660
      %v1002 = vunpack.c.l.b16 %v661
      %v1003 = vunpack.c.h.b16 %v661
      %v1004 = vunpack.c.l.b16 %v662
      %v1005 = vunpack.c.h.b16 %v662
      %v1006 = vunpack.c.l.b16 %v663
      %v1007 = vunpack.c.h.b16 %v663
      %v1008 = vunpack.c.l.b16 %v664
      %v1009 = vunpack.c.h.b16 %v664
      %v1010 = vunpack.c.l.b16 %v665
      %v1011 = vunpack.c.h.b16 %v665
      %v1012 = vunpack.c.l.b16 %v666
      %v1013 = vunpack.c.h.b16 %v666
      %v1014 = vunpack.c.l.b16 %v667
      %v1015 = vunpack.c.h.b16 %v667
      %v1016 = vunpack.c.l.b16 %v668
      %v1017 = vunpack.c.h.b16 %v668
      %v1018 = vunpack.c.l.b16 %v669
      %v1019 = vunpack.c.h.b16 %v669
      %v1020 = vunpack.c.l.b16 %v670
      %v1021 = vunpack.c.h.b16 %v670
      %v1022 = vunpack.c.l.b16 %v671
      %v1023 = vunpack.c.h.b16 %v671
      %v1024 = vunpack.c.l.b16 %v672
      %v1025 = vunpack.c.h.b16 %v672
      %v1026 = vunpack.c.l.b16 %v673
      %v1027 = vunpack.c.h.b16 %v673
      %v1028 = vunpack.c.l.b16 %v674
      %v1029 = vunpack.c.h.b16 %v674
      %v1030 = vunpack.c.l.b16 %v675
      %v1031 = vunpack.c.h.b16 %v675
      %v1032 = vunpack.c.l.b16 %v676
      %v1033 = vunpack.c.h.b16 %v676
      %v1034 = vunpack.c.l.b16 %v677
      %v1035 = vunpack.c.h.b16 %v677
      %v1036 = vunpack.c.l.b16 %v678
      %v1037 = vunpack.c.h.b16 %v678
      %v1038 = vunpack.c.l.b16 %v679
      %v1039 = vunpack.c.h.b16 %v679
      %v1040 = vunpack.c.l.b16 %v680
      %v1041 = vunpack.c.h.b16 %v680
      %v1042 = vunpack.c.l.b16 %v681
      %v1043 = vunpack.c.h.b16 %v681
      %v1044 = vunpack.c.l.b16 %v682
      %v1045 = vunpack.c.h.b16 %v682
      %v1046 = vunpack.c.l.b16 %v683
      %v1047 = vunpack.c.h.b16 %v683
      %v1048 = vunpack.c.l.b16 %v684
      %v1049 = vunpack.c.h.b16 %v684
      %v1050 = vunpack.c.l.b16 %v685
      %v1051 = vunpack.c.h.b16 %v685
      %v1052 = vunpack.c.l.b16 %v686
      %v1053 = vunpack.c.h.b16 %v686
      %v1054 = vunpack.c.l.b16 %v687
      %v1055 = vunpack.c.h.b16 %v687
      %v1056 = vunpack.c.l.b16 %v688
      %v1057 = vunpack.c.h.b16 %v688
      %v1058 = vunpack.c.l.b16 %v689
      %v1059 = vunpack.c.h.b16 %v689
      %v1060 = vunpack.c.l.b16 %v690
      %v1061 = vunpack.c.h.b16 %v690
      %v1062 = vunpack.c.l.b16 %v691
      %v1063 = vunpack.c.h.b16 %v691
      %v1064 = vunpack.c.l.b16 %v692
      %v1065 = vunpack.c.h.b16 %v692
      %v1066 = vunpack.c.l.b16 %v693
      %v1067 = vunpack.c.h.b16 %v693
      %v1068 = vunpack.c.l.b16 %v694
      %v1069 = vunpack.c.h.b16 %v694
      %v1070 = vunpack.c.l.b16 %v695
      %v1071 = vunpack.c.h.b16 %v695
      %v1072 = vunpack.c.l.b16 %v696
      %v1073 = vunpack.c.h.b16 %v696
      %v1074 = vunpack.c.l.b16 %v697
      %v1075 = vunpack.c.h.b16 %v697
      %v1076 = vunpack.c.l.b16 %v698
      %v1077 = vunpack.c.h.b16 %v698
      %v1078 = vunpack.c.l.b16 %v699
      %v1079 = vunpack.c.h.b16 %v699
      %v1080 = vunpack.c.l.b16 %v700
      %v1081 = vunpack.c.h.b16 %v700
      %v1082 = vunpack.c.l.b16 %v701
      %v1083 = vunpack.c.h.b16 %v701
      %v1084 = vunpack.c.l.b16 %v702
      %v1085 = vunpack.c.h.b16 %v702
      %v1086 = vunpack.c.l.b16 %v703
      %v1087 = vunpack.c.h.b16 %v703
      %v1088 = vpack.c.b16 %v840, %v832
      %v1089 = vpack.c.b16 %v841, %v833
      %v1090 = vpack.c.b16 %v842, %v834
      %v1091 = vpack.c.b16 %v843, %v835
      %v1092 = vpack.c.b16 %v844, %v836
      %v1093 = vpack.c.b16 %v845, %v837
      %v1094 = vpack.c.b16 %v846, %v838
      %v1095 = vpack.c.b16 %v847, %v839
      %v1096 = vpack.c.b16 %v856, %v848
      %v1097 = vpack.c.b16 %v857, %v849
      %v1098 = vpack.c.b16 %v858, %v850
      %v1099 = vpack.c.b16 %v859, %v851
      %v1100 = vpack.c.b16 %v860, %v852
      %v1101 = vpack.c.b16 %v861, %v853
      %v1102 = vpack.c.b16 %v862, %v854
      %v1103 = vpack.c.b16 %v863, %v855
      %v1104 = vpack.c.b16 %v872, %v864
      %v1105 = vpack.c.b16 %v873, %v865
      %v1106 = vpack.c.b16 %v874, %v866
      %v1107 = vpack.c.b16 %v875, %v867
      %v1108 = vpack.c.b16 %v876, %v868
      %v1109 = vpack.c.b16 %v877, %v869
      %v1110 = vpack.c.b16 %v878, %v870
      %v1111 = vpack.c.b16 %v879, %v871
      %v1112 = vpack.c.b16 %v888, %v880
      %v1113 = vpack.c.b16 %v889, %v881
      %v1114 = vpack.c.b16 %v890, %v882
      %v1115 = vpack.c.b16 %v891, %v883
      %v1116 = vpack.c.b16 %v892, %v884
      %v1117 = vpack.c.b16 %v893, %v885
      %v1118 = vpack.c.b16 %v894, %v886
      %v1119 = vpack.c.b16 %v895, %v887
      %v1120 = vpack.c.b16 %v904, %v896
      %v1121 = vpack.c.b16 %v905, %v897
      %v1122 = vpack.c.b16 %v906, %v898
      %v1123 = vpack.c.b16 %v907, %v899
      %v1124 = vpack.c.b16 %v908, %v900
      %v1125 = vpack.c.b16 %v909, %v901
      %v1126 = vpack.c.b16 %v910, %v902
      %v1127 = vpack.c.b16 %v911, %v903
      %v1128 = vpack.c.b16 %v920, %v912
      %v1129 = vpack.c.b16 %v921, %v913
      %v1130 = vpack.c.b16 %v922, %v914
      %v1131 = vpack.c.b16 %v923, %v915
      %v1132 = vpack.c.b16 %v924, %v916
      %v1133 = vpack.c.b16 %v925, %v917
      %v1134 = vpack.c.b16 %v926, %v918
      %v1135 = vpack.c.b16 %v927, %v919
      %v1136 = vpack.c.b16 %v936, %v928
      %v1137 = vpack.c.b16 %v937, %v929
      %v1138 = vpack.c.b16 %v938, %v930
      %v1139 = vpack.c.b16 %v939, %v931
      %v1140 = vpack.c.b16 %v940, %v932
      %v1141 = vpack.c.b16 %v941, %v933
      %v1142 = vpack.c.b16 %v942, %v934
      %v1143 = vpack.c.b16 %v943, %v935
      %v1144 = vpack.c.b16 %v952, %v944
      %v1145 = vpack.c.b16 %v953, %v945
      %v1146 = vpack.c.b16 %v954, %v946
      %v1147 = vpack.c.b16 %v955, %v947
      %v1148 = vpack.c.b16 %v956, %v948
      %v1149 = vpack.c.b16 %v957, %v949
      %v1150 = vpack.c.b16 %v958, %v950
      %v1151 = vpack.c.b16 %v959, %v951
      %v1152 = vpack.c.b16 %v968, %v960
      %v1153 = vpack.c.b16 %v969, %v961
      %v1154 = vpack.c.b16 %v970, %v962
      %v1155 = vpack.c.b16 %v971, %v963
      %v1156 = vpack.c.b16 %v972, %v964
      %v1157 = vpack.c.b16 %v973, %v965
      %v1158 = vpack.c.b16 %v974, %v966
      %v1159 = vpack.c.b16 %v975, %v967
      %v1160 = vpack.c.b16 %v984, %v976
      %v1161 = vpack.c.b16 %v985, %v977
      %v1162 = vpack.c.b16 %v986, %v978
      %v1163 = vpack.c.b16 %v987, %v979
      %v1164 = vpack.c.b16 %v988, %v980
      %v1165 = vpack.c.b16 %v989, %v981
      %v1166 = vpack.c.b16 %v990, %v982
      %v1167 = vpack.c.b16 %v991, %v983
      %v1168 = vpack.c.b16 %v1000, %v992
      %v1169 = vpack.c.b16 %v1001, %v993
      %v1170 = vpack.c.b16 %v1002, %v994
      %v1171 = vpack.c.b16 %v1003, %v995
      %v1172 = vpack.c.b16 %v1004, %v996
      %v1173 = vpack.c.b16 %v1005, %v997
      %v1174 = vpack.c.b16 %v1006, %v998
      %v1175 = vpack.c.b16 %v1007, %v999
      %v1176 = vpack.c.b16 %v1016, %v1008
      %v1177 = vpack.c.b16 %v1017, %v1009
      %v1178 = vpack.c.b16 %v1018, %v1010
      %v1179 = vpack.c.b16 %v1019, %v1011
      %v1180 = vpack.c.b16 %v1020, %v1012
      %v1181 = vpack.c.b16 %v1021, %v1013
      %v1182 = vpack.c.b16 %v1022, %v1014
      %v1183 = vpack.c.b16 %v1023, %v1015
      %v1184 = vpack.c.b16 %v1032, %v1024
      %v1185 = vpack.c.b16 %v1033, %v1025
      %v1186 = vpack.c.b16 %v1034, %v1026
      %v1187 = vpack.c.b16 %v1035, %v1027
      %v1188 = vpack.c.b16 %v1036, %v1028
      %v1189 = vpack.c.b16 %v1037, %v1029
      %v1190 = vpack.c.b16 %v1038, %v1030
      %v1191 = vpack.c.b16 %v1039, %v1031
      %v1192 = vpack.c.b16 %v1048, %v1040
      %v1193 = vpack.c.b16 %v1049, %v1041
      %v1194 = vpack.c.b16 %v1050, %v1042
      %v1195 = vpack.c.b16 %v1051, %v1043
      %v1196 = vpack.c.b16 %v1052, %v1044
      %v1197 = vpack.c.b16 %v1053, %v1045
      %v1198 = vpack.c.b16 %v1054, %v1046
      %v1199 = vpack.c.b16 %v1055, %v1047
      %v1200 = vpack.c.b16 %v1064, %v1056
      %v1201 = vpack.c.b16 %v1065, %v1057
      %v1202 = vpack.c.b16 %v1066, %v1058
      %v1203 = vpack.c.b16 %v1067, %v1059
      %v1204 = vpack.c.b16 %v1068, %v1060
      %v1205 = vpack.c.b16 %v1069, %v1061
      %v1206 = vpack.c.b16 %v1070, %v1062
      %v1207 = vpack.c.b16 %v1071, %v1063
      %v1208 = vpack.c.b16 %v1080, %v1072
      %v1209 = vpack.c.b16 %v1081, %v1073
      %v1210 = vpack.c.b16 %v1082, %v1074
      %v1211 = vpack.c.b16 %v1083, %v1075
      %v1212 = vpack.c.b16 %v1084, %v1076
      %v1213 = vpack.c.b16 %v1085, %v1077
      %v1214 = vpack.c.b16 %v1086, %v1078
      %v1215 = vpack.c.b16 %v1087, %v1079
      %1344 = vmatpush.bf16.msra.mxu0 %v1144
      %1345 = vmatpush.bf16.msra.mxu0 %v1136
      %1346 = vmatpush.bf16.msra.mxu0 %v1128
      %1347 = vmatpush.bf16.msra.mxu0 %v1120
      %1348 = vmatpush.bf16.msra.mxu0 %v1112
      %1349 = vmatpush.bf16.msra.mxu0 %v1104
      %1350 = vmatpush.bf16.msra.mxu0 %v1096
      %1351 = vmatpush.bf16.msra.mxu0 %v1088
      %1352 = vmatmul.bf16.gmra.mxu0 %v574
      %v1353 = vpop.f32.mrf.mxu0
      %v1354 = vadd.f32 0.0, %v1353
      %v1355 = vpop.f32.mrf.mxu0
      %1356 = vdwg.mxu0
      %1357 = vmatpush.bf16.msra.mxu0 %v1208
      %1358 = vmatpush.bf16.msra.mxu0 %v1200
      %1359 = vmatpush.bf16.msra.mxu0 %v1192
      %1360 = vmatpush.bf16.msra.mxu0 %v1184
      %1361 = vmatpush.bf16.msra.mxu0 %v1176
      %1362 = vmatpush.bf16.msra.mxu0 %v1168
      %1363 = vmatpush.bf16.msra.mxu0 %v1160
      %1364 = vmatpush.bf16.msra.mxu0 %v1152
      %1365 = vmatmul.bf16.gmra.mxu0 %v575
      %v1366 = vpop.f32.mrf.mxu0
      %v1367 = vadd.f32 %v1354, %v1366
      %v1368 = vpop.f32.mrf.mxu0
      %1369 = vdwg.mxu0
      %1370 = vmatpush.bf16.msra.mxu0 %v1145
      %1371 = vmatpush.bf16.msra.mxu0 %v1137
      %1372 = vmatpush.bf16.msra.mxu0 %v1129
      %1373 = vmatpush.bf16.msra.mxu0 %v1121
      %1374 = vmatpush.bf16.msra.mxu0 %v1113
      %1375 = vmatpush.bf16.msra.mxu0 %v1105
      %1376 = vmatpush.bf16.msra.mxu0 %v1097
      %1377 = vmatpush.bf16.msra.mxu0 %v1089
      %1378 = vmatmul.bf16.gmra.mxu0 %v574
      %v1379 = vpop.f32.mrf.mxu0
      %v1380 = vadd.f32 0.0, %v1379
      %v1381 = vpop.f32.mrf.mxu0
      %1382 = vdwg.mxu0
      %1383 = vmatpush.bf16.msra.mxu0 %v1209
      %1384 = vmatpush.bf16.msra.mxu0 %v1201
      %1385 = vmatpush.bf16.msra.mxu0 %v1193
      %1386 = vmatpush.bf16.msra.mxu0 %v1185
      %1387 = vmatpush.bf16.msra.mxu0 %v1177
      %1388 = vmatpush.bf16.msra.mxu0 %v1169
      %1389 = vmatpush.bf16.msra.mxu0 %v1161
      %1390 = vmatpush.bf16.msra.mxu0 %v1153
      %1391 = vmatmul.bf16.gmra.mxu0 %v575
      %v1392 = vpop.f32.mrf.mxu0
      %v1393 = vadd.f32 %v1380, %v1392
      %v1394 = vpop.f32.mrf.mxu0
      %1395 = vdwg.mxu0
      %1396 = vmatpush.bf16.msra.mxu0 %v1146
      %1397 = vmatpush.bf16.msra.mxu0 %v1138
      %1398 = vmatpush.bf16.msra.mxu0 %v1130
      %1399 = vmatpush.bf16.msra.mxu0 %v1122
      %1400 = vmatpush.bf16.msra.mxu0 %v1114
      %1401 = vmatpush.bf16.msra.mxu0 %v1106
      %1402 = vmatpush.bf16.msra.mxu0 %v1098
      %1403 = vmatpush.bf16.msra.mxu0 %v1090
      %1404 = vmatmul.bf16.gmra.mxu0 %v574
      %v1405 = vpop.f32.mrf.mxu0
      %v1406 = vadd.f32 0.0, %v1405
      %v1407 = vpop.f32.mrf.mxu0
      %1408 = vdwg.mxu0
      %1409 = vmatpush.bf16.msra.mxu0 %v1210
      %1410 = vmatpush.bf16.msra.mxu0 %v1202
      %1411 = vmatpush.bf16.msra.mxu0 %v1194
      %1412 = vmatpush.bf16.msra.mxu0 %v1186
      %1413 = vmatpush.bf16.msra.mxu0 %v1178
      %1414 = vmatpush.bf16.msra.mxu0 %v1170
      %1415 = vmatpush.bf16.msra.mxu0 %v1162
      %1416 = vmatpush.bf16.msra.mxu0 %v1154
      %1417 = vmatmul.bf16.gmra.mxu0 %v575
      %v1418 = vpop.f32.mrf.mxu0
      %v1419 = vadd.f32 %v1406, %v1418
      %v1420 = vpop.f32.mrf.mxu0
      %1421 = vdwg.mxu0
      %1422 = vmatpush.bf16.msra.mxu0 %v1147
      %1423 = vmatpush.bf16.msra.mxu0 %v1139
      %1424 = vmatpush.bf16.msra.mxu0 %v1131
      %1425 = vmatpush.bf16.msra.mxu0 %v1123
      %1426 = vmatpush.bf16.msra.mxu0 %v1115
      %1427 = vmatpush.bf16.msra.mxu0 %v1107
      %1428 = vmatpush.bf16.msra.mxu0 %v1099
      %1429 = vmatpush.bf16.msra.mxu0 %v1091
      %1430 = vmatmul.bf16.gmra.mxu0 %v574
      %v1431 = vpop.f32.mrf.mxu0
      %v1432 = vadd.f32 0.0, %v1431
      %v1433 = vpop.f32.mrf.mxu0
      %1434 = vdwg.mxu0
      %1435 = vmatpush.bf16.msra.mxu0 %v1211
      %1436 = vmatpush.bf16.msra.mxu0 %v1203
      %1437 = vmatpush.bf16.msra.mxu0 %v1195
      %1438 = vmatpush.bf16.msra.mxu0 %v1187
      %1439 = vmatpush.bf16.msra.mxu0 %v1179
      %1440 = vmatpush.bf16.msra.mxu0 %v1171
      %1441 = vmatpush.bf16.msra.mxu0 %v1163
      %1442 = vmatpush.bf16.msra.mxu0 %v1155
      %1443 = vmatmul.bf16.gmra.mxu0 %v575
      %v1444 = vpop.f32.mrf.mxu0
      %v1445 = vadd.f32 %v1432, %v1444
      %v1446 = vpop.f32.mrf.mxu0
      %1447 = vdwg.mxu0
      %1448 = vmatpush.bf16.msra.mxu0 %v1148
      %1449 = vmatpush.bf16.msra.mxu0 %v1140
      %1450 = vmatpush.bf16.msra.mxu0 %v1132
      %1451 = vmatpush.bf16.msra.mxu0 %v1124
      %1452 = vmatpush.bf16.msra.mxu0 %v1116
      %1453 = vmatpush.bf16.msra.mxu0 %v1108
      %1454 = vmatpush.bf16.msra.mxu0 %v1100
      %1455 = vmatpush.bf16.msra.mxu0 %v1092
      %1456 = vmatmul.bf16.gmra.mxu0 %v574
      %v1457 = vpop.f32.mrf.mxu0
      %v1458 = vadd.f32 0.0, %v1457
      %v1459 = vpop.f32.mrf.mxu0
      %1460 = vdwg.mxu0
      %1461 = vmatpush.bf16.msra.mxu0 %v1212
      %1462 = vmatpush.bf16.msra.mxu0 %v1204
      %1463 = vmatpush.bf16.msra.mxu0 %v1196
      %1464 = vmatpush.bf16.msra.mxu0 %v1188
      %1465 = vmatpush.bf16.msra.mxu0 %v1180
      %1466 = vmatpush.bf16.msra.mxu0 %v1172
      %1467 = vmatpush.bf16.msra.mxu0 %v1164
      %1468 = vmatpush.bf16.msra.mxu0 %v1156
      %1469 = vmatmul.bf16.gmra.mxu0 %v575
      %v1470 = vpop.f32.mrf.mxu0
      %v1471 = vadd.f32 %v1458, %v1470
      %v1472 = vpop.f32.mrf.mxu0
      %1473 = vdwg.mxu0
      %1474 = vmatpush.bf16.msra.mxu0 %v1149
      %1475 = vmatpush.bf16.msra.mxu0 %v1141
      %1476 = vmatpush.bf16.msra.mxu0 %v1133
      %1477 = vmatpush.bf16.msra.mxu0 %v1125
      %1478 = vmatpush.bf16.msra.mxu0 %v1117
      %1479 = vmatpush.bf16.msra.mxu0 %v1109
      %1480 = vmatpush.bf16.msra.mxu0 %v1101
      %1481 = vmatpush.bf16.msra.mxu0 %v1093
      %1482 = vmatmul.bf16.gmra.mxu0 %v574
      %v1483 = vpop.f32.mrf.mxu0
      %v1484 = vadd.f32 0.0, %v1483
      %v1485 = vpop.f32.mrf.mxu0
      %1486 = vdwg.mxu0
      %1487 = vmatpush.bf16.msra.mxu0 %v1213
      %1488 = vmatpush.bf16.msra.mxu0 %v1205
      %1489 = vmatpush.bf16.msra.mxu0 %v1197
      %1490 = vmatpush.bf16.msra.mxu0 %v1189
      %1491 = vmatpush.bf16.msra.mxu0 %v1181
      %1492 = vmatpush.bf16.msra.mxu0 %v1173
      %1493 = vmatpush.bf16.msra.mxu0 %v1165
      %1494 = vmatpush.bf16.msra.mxu0 %v1157
      %1495 = vmatmul.bf16.gmra.mxu0 %v575
      %v1496 = vpop.f32.mrf.mxu0
      %v1497 = vadd.f32 %v1484, %v1496
      %v1498 = vpop.f32.mrf.mxu0
      %1499 = vdwg.mxu0
      %1500 = vmatpush.bf16.msra.mxu0 %v1150
      %1501 = vmatpush.bf16.msra.mxu0 %v1142
      %1502 = vmatpush.bf16.msra.mxu0 %v1134
      %1503 = vmatpush.bf16.msra.mxu0 %v1126
      %1504 = vmatpush.bf16.msra.mxu0 %v1118
      %1505 = vmatpush.bf16.msra.mxu0 %v1110
      %1506 = vmatpush.bf16.msra.mxu0 %v1102
      %1507 = vmatpush.bf16.msra.mxu0 %v1094
      %1508 = vmatmul.bf16.gmra.mxu0 %v574
      %v1509 = vpop.f32.mrf.mxu0
      %v1510 = vadd.f32 0.0, %v1509
      %v1511 = vpop.f32.mrf.mxu0
      %1512 = vdwg.mxu0
      %1513 = vmatpush.bf16.msra.mxu0 %v1214
      %1514 = vmatpush.bf16.msra.mxu0 %v1206
      %1515 = vmatpush.bf16.msra.mxu0 %v1198
      %1516 = vmatpush.bf16.msra.mxu0 %v1190
      %1517 = vmatpush.bf16.msra.mxu0 %v1182
      %1518 = vmatpush.bf16.msra.mxu0 %v1174
      %1519 = vmatpush.bf16.msra.mxu0 %v1166
      %1520 = vmatpush.bf16.msra.mxu0 %v1158
      %1521 = vmatmul.bf16.gmra.mxu0 %v575
      %v1522 = vpop.f32.mrf.mxu0
      %v1523 = vadd.f32 %v1510, %v1522
      %v1524 = vpop.f32.mrf.mxu0
      %1525 = vdwg.mxu0
      %1526 = vmatpush.bf16.msra.mxu0 %v1151
      %1527 = vmatpush.bf16.msra.mxu0 %v1143
      %1528 = vmatpush.bf16.msra.mxu0 %v1135
      %1529 = vmatpush.bf16.msra.mxu0 %v1127
      %1530 = vmatpush.bf16.msra.mxu0 %v1119
      %1531 = vmatpush.bf16.msra.mxu0 %v1111
      %1532 = vmatpush.bf16.msra.mxu0 %v1103
      %1533 = vmatpush.bf16.msra.mxu0 %v1095
      %1534 = vmatmul.bf16.gmra.mxu0 %v574
      %v1535 = vpop.f32.mrf.mxu0
      %v1536 = vadd.f32 0.0, %v1535
      %v1537 = vpop.f32.mrf.mxu0
      %1538 = vdwg.mxu0
      %1539 = vmatpush.bf16.msra.mxu0 %v1215
      %1540 = vmatpush.bf16.msra.mxu0 %v1207
      %1541 = vmatpush.bf16.msra.mxu0 %v1199
      %1542 = vmatpush.bf16.msra.mxu0 %v1191
      %1543 = vmatpush.bf16.msra.mxu0 %v1183
      %1544 = vmatpush.bf16.msra.mxu0 %v1175
      %1545 = vmatpush.bf16.msra.mxu0 %v1167
      %1546 = vmatpush.bf16.msra.mxu0 %v1159
      %1547 = vmatmul.bf16.gmra.mxu0 %v575
      %v1548 = vpop.f32.mrf.mxu0
      %v1549 = vadd.f32 %v1536, %v1548
      %v1550 = vpop.f32.mrf.mxu0
      %1551 = vdwg.mxu0
      %v1552 = vadd.f32 %v566, %v1367
      %v1553 = vadd.f32 %v567, %v1393
      %v1554 = vadd.f32 %v568, %v1419
      %v1555 = vadd.f32 %v569, %v1445
      %v1556 = vadd.f32 %v570, %v1471
      %v1557 = vadd.f32 %v571, %v1497
      %v1558 = vadd.f32 %v572, %v1523
      %v1559 = vadd.f32 %v573, %v1549
      %v1560 = vmul.f32 %v1552, 0.5
      %v1561 = vmul.f32 %v1553, 0.5
      %v1562 = vmul.f32 %v1554, 0.5
      %v1563 = vmul.f32 %v1555, 0.5
      %v1564 = vmul.f32 %v1556, 0.5
      %v1565 = vmul.f32 %v1557, 0.5
      %v1566 = vtanh.pop %v1560
      %v1567 = vtanh.pop %v1561
      %v1568 = vtanh.pop %v1562
      %v1569 = vtanh.pop %v1563
      %v1570 = vtanh.pop %v1564
      %v1571 = vtanh.pop %v1565
      %v1572 = vadd.f32 %v1566, 1.0
      %v1573 = vadd.f32 %v1567, 1.0
      %v1574 = vadd.f32 %v1568, 1.0
      %v1575 = vadd.f32 %v1569, 1.0
      %v1576 = vadd.f32 %v1570, 1.0
      %v1577 = vadd.f32 %v1571, 1.0
      %v1578 = vmul.f32 %v1572, 0.5
      %v1579 = vmul.f32 %v1573, 0.5
      %v1580 = vmul.f32 %v1574, 0.5
      %v1581 = vmul.f32 %v1575, 0.5
      %v1582 = vmul.f32 %v1576, 0.5
      %v1583 = vmul.f32 %v1577, 0.5
      %v1584 = vtanh.pop %v1558
      %v1585 = vtanh.pop %v1559
      %v1586 = vmul.f32 %v1580, %v561
      %v1587 = vmul.f32 %v1581, %v562
      %v1588 = vmul.f32 %v1578, %v1584
      %v1589 = vmul.f32 %v1579, %v1585
      %v1590 = vadd.f32 %v1586, %v1588
      %v1591 = vadd.f32 %v1587, %v1589
      %v1592 = vtanh.pop %v1590
      %v1593 = vtanh.pop %v1591
      %v1594 = vmul.f32 %v1582, %v1592
      %v1595 = vmul.f32 %v1583, %v1593
    $region58: #{model_forward.1} parent=1 // loop_footer
      %s558 = sadd.s32 1, %s554
    $region59: #{model_forward.1} parent=1 // loop_footer_branch
      %553 = sbr.rel target = $region55
    $region60: #{model_forward.1} parent=1 // loop_exit
      _
    %v1596 = vpack.c.bf16 %v559, %v559
    %v1597 = vpack.c.bf16 %v560, %v560
    %v1598 = vld [vmem:[#allocation11] sm:$0xf]
    %v1599 = vld [vmem:[#allocation11 + $0x4] sm:$0xf]
    %v1600 = vld [vmem:[#allocation11 + $0x8] sm:$0xf]
    %v1601 = vld [vmem:[#allocation11 + $0xc] sm:$0xf]
    %v1602 = vld [vmem:[#allocation11 + $0x10] sm:$0xf]
    %v1603 = vld [vmem:[#allocation11 + $0x14] sm:$0xf]
    %v1604 = vld [vmem:[#allocation11 + $0x18] sm:$0xf]
    %v1605 = vld [vmem:[#allocation11 + $0x1c] sm:$0xf]
    %v1606 = vld [vmem:[#allocation11 + $0x20] sm:$0xf]
    %v1607 = vld [vmem:[#allocation11 + $0x24] sm:$0xf]
    %v1608 = vld [vmem:[#allocation11 + $0x28] sm:$0xf]
    %v1609 = vld [vmem:[#allocation11 + $0x2c] sm:$0xf]
    %v1610 = vld [vmem:[#allocation11 + $0x30] sm:$0xf]
    %v1611 = vld [vmem:[#allocation11 + $0x34] sm:$0xf]
    %v1612 = vld [vmem:[#allocation11 + $0x38] sm:$0xf]
    %v1613 = vld [vmem:[#allocation11 + $0x3c] sm:$0xf]
    %v1614 = vld [vmem:[#allocation11 + $0x40] sm:$0xf]
    %v1615 = vld [vmem:[#allocation11 + $0x44] sm:$0xf]
    %v1616 = vld [vmem:[#allocation11 + $0x48] sm:$0xf]
    %v1617 = vld [vmem:[#allocation11 + $0x4c] sm:$0xf]
    %v1618 = vld [vmem:[#allocation11 + $0x50] sm:$0xf]
    %v1619 = vld [vmem:[#allocation11 + $0x54] sm:$0xf]
    %v1620 = vld [vmem:[#allocation11 + $0x58] sm:$0xf]
    %v1621 = vld [vmem:[#allocation11 + $0x5c] sm:$0xf]
    %v1622 = vld [vmem:[#allocation11 + $0x60] sm:$0xf]
    %v1623 = vld [vmem:[#allocation11 + $0x64] sm:$0xf]
    %v1624 = vld [vmem:[#allocation11 + $0x68] sm:$0xf]
    %v1625 = vld [vmem:[#allocation11 + $0x6c] sm:$0xf]
    %v1626 = vld [vmem:[#allocation11 + $0x70] sm:$0xf]
    %v1627 = vld [vmem:[#allocation11 + $0x74] sm:$0xf]
    %v1628 = vld [vmem:[#allocation11 + $0x78] sm:$0xf]
    %v1629 = vld [vmem:[#allocation11 + $0x7c] sm:$0xf]
    %v1630 = vld [vmem:[%s7] sm:$0x1]
    %v1632 = vperm.slane %v1630, 0
    %v1666 = vunpack.c.l.b16 %v1598
    %v1667 = vunpack.c.l.b16 %v1599
    %v1668 = vunpack.c.l.b16 %v1600
    %v1669 = vunpack.c.l.b16 %v1601
    %v1670 = vunpack.c.l.b16 %v1602
    %v1671 = vunpack.c.l.b16 %v1603
    %v1672 = vunpack.c.l.b16 %v1604
    %v1673 = vunpack.c.l.b16 %v1605
    %v1674 = vunpack.c.l.b16 %v1606
    %v1675 = vunpack.c.l.b16 %v1607
    %v1676 = vunpack.c.l.b16 %v1608
    %v1677 = vunpack.c.l.b16 %v1609
    %v1678 = vunpack.c.l.b16 %v1610
    %v1679 = vunpack.c.l.b16 %v1611
    %v1680 = vunpack.c.l.b16 %v1612
    %v1681 = vunpack.c.l.b16 %v1613
    %v1682 = vunpack.c.l.b16 %v1614
    %v1683 = vunpack.c.l.b16 %v1615
    %v1684 = vunpack.c.l.b16 %v1616
    %v1685 = vunpack.c.l.b16 %v1617
    %v1686 = vunpack.c.l.b16 %v1618
    %v1687 = vunpack.c.l.b16 %v1619
    %v1688 = vunpack.c.l.b16 %v1620
    %v1689 = vunpack.c.l.b16 %v1621
    %v1690 = vunpack.c.l.b16 %v1622
    %v1691 = vunpack.c.l.b16 %v1623
    %v1692 = vunpack.c.l.b16 %v1624
    %v1693 = vunpack.c.l.b16 %v1625
    %v1694 = vunpack.c.l.b16 %v1626
    %v1695 = vunpack.c.l.b16 %v1627
    %v1696 = vunpack.c.l.b16 %v1628
    %v1697 = vunpack.c.l.b16 %v1629
    %v1698 = vpack.c.b16 %v1667, %v1666
    %v1699 = vpack.c.b16 %v1669, %v1668
    %v1700 = vpack.c.b16 %v1671, %v1670
    %v1701 = vpack.c.b16 %v1673, %v1672
    %v1702 = vpack.c.b16 %v1675, %v1674
    %v1703 = vpack.c.b16 %v1677, %v1676
    %v1704 = vpack.c.b16 %v1679, %v1678
    %v1705 = vpack.c.b16 %v1681, %v1680
    %v1706 = vpack.c.b16 %v1683, %v1682
    %v1707 = vpack.c.b16 %v1685, %v1684
    %v1708 = vpack.c.b16 %v1687, %v1686
    %v1709 = vpack.c.b16 %v1689, %v1688
    %v1710 = vpack.c.b16 %v1691, %v1690
    %v1711 = vpack.c.b16 %v1693, %v1692
    %v1712 = vpack.c.b16 %v1695, %v1694
    %v1713 = vpack.c.b16 %v1697, %v1696
    %1730 = vmatpush.bf16.msra.mxu0 %v1705
    %1731 = vmatpush.bf16.msra.mxu0 %v1704
    %1732 = vmatpush.bf16.msra.mxu0 %v1703
    %1733 = vmatpush.bf16.msra.mxu0 %v1702
    %1734 = vmatpush.bf16.msra.mxu0 %v1701
    %1735 = vmatpush.bf16.msra.mxu0 %v1700
    %1736 = vmatpush.bf16.msra.mxu0 %v1699
    %1737 = vmatpush.bf16.msra.mxu0 %v1698
    %1738 = vmatmul.bf16.gmra.mxu0 %v1596
    %v1739 = vpop.f32.mrf.mxu0
    %v1740 = vadd.f32 %v1632, %v1739
    %v1741 = vpop.f32.mrf.mxu0
    %1742 = vdwg.mxu0
    %1743 = vmatpush.bf16.msra.mxu0 %v1713
    %1744 = vmatpush.bf16.msra.mxu0 %v1712
    %1745 = vmatpush.bf16.msra.mxu0 %v1711
    %1746 = vmatpush.bf16.msra.mxu0 %v1710
    %1747 = vmatpush.bf16.msra.mxu0 %v1709
    %1748 = vmatpush.bf16.msra.mxu0 %v1708
    %1749 = vmatpush.bf16.msra.mxu0 %v1707
    %1750 = vmatpush.bf16.msra.mxu0 %v1706
    %1751 = vmatmul.bf16.gmra.mxu0 %v1597
    %v1752 = vpop.f32.mrf.mxu0
    %v1753 = vadd.f32 %v1740, %v1752
    %v1754 = vpop.f32.mrf.mxu0
    %1755 = vdwg.mxu0
    %1756 = vst [vmem:[%s8] sm:$0xff] %v1753
    // Predicated region
    $region61: #{model_forward.1} parent=1 // pred_check
      _
    $region62: #{model_forward.1} parent=1 // pred_check_branch
      %1758 = sbr.rel (0) target = $region64
    $region63: #{model_forward.1} parent=1 // pred_region
      _
    $region64: #{model_forward.1} parent=1 // pred_fallthru
      _
    // Predicated region
    $region65: #{model_forward.1} parent=1 // pred_check
      _
    $region66: #{model_forward.1} parent=1 // pred_check_branch
      %1760 = sbr.rel (0) target = $region68
    $region67: #{model_forward.1} parent=1 // pred_region
      _
    $region68: #{model_forward.1} parent=1 // pred_fallthru
      _
    %1761 = vsyncpa [#allocation4], 1
    %1762 = vsyncpa [#allocation10], 1
    %1763 = vsyncpa [#allocation5], 1
    %1764 = vsyncpa [#allocation7], 1

</llo_original>
